<compile_context>
chip_gen: v7x
topology: tpu7x:2x2x1
jax: 0.10.0
libtpu: 0.0.40
codegen_flags: <defaults>
</compile_context>

<pallas_src>
import math
import functools

import jax
import jax.numpy as jnp
from jax.experimental import pallas as pl
from jax.experimental.pallas import tpu as pltpu


NEG_INF = -1e30


def _round_up(x, m):
    return (x + m - 1) // m * m


# ----------------------------------------------------------------------------- kernel

def transformer_stack_kernel(n_heads,
                             x0_ref, mask_ref,
                             wqkv_ref, wo_ref, w1_ref, w2_ref, vec_ref,
                             wd_ref, bd_ref,
                             o_ref, act_ref):
    """Full TransformerEncoder stack + final Linear + LogSoftmax.

    grid = (n_layers,)  ("arbitrary": layers are sequential; activation is resident
    in the `act_ref` VMEM scratch; per-layer weights are selected by the layer index
    in their BlockSpec index_maps).

    Shapes (N = B*S):
      x0_ref   (N, D)        f32   embeddings * sqrt(D) + positional encoding
      mask_ref (N, N)        f32   block-diagonal (per-batch) causal additive mask
      wqkv_ref (1, D, 3D)    bf16  fused in-projection (pre-transposed)
      wo_ref   (1, H, dh, D) bf16  out-projection split per head
      w1_ref   (1, D, F)     bf16  FFN up
      w2_ref   (1, F, D)     bf16  FFN down
      vec_ref  (1, 8, PAD)   f32   packed biases / LayerNorm params
      wd_ref   (D, Vp)       bf16  final dense weight, vocab padded lane-dense
      bd_ref   (1, Vp)       f32   final dense bias (pad lanes = -1e30)
      o_ref    (N, Vp)       f32   log-softmax output (lane-dense, written once)
      act_ref  (N, D)        f32   resident activations (VMEM scratch)
    """
    layer = pl.program_id(0)
    n_layers = pl.num_programs(0)
    N, D = act_ref.shape
    F = w1_ref.shape[2]
    dh = D // n_heads
    scale = 1.0 / math.sqrt(dh)

    @pl.when(layer == 0)
    def _():
        act_ref[...] = x0_ref[...]

    x = act_ref[...]                                   # (N, D) f32

    vec = vec_ref[0]                                   # (8, PAD) f32
    bqkv = vec[0, :3 * D]
    bo = vec[1, :D]
    bf1 = vec[2, :F]
    bf2 = vec[3, :D]
    ln1g, ln1b = vec[4, :D], vec[5, :D]
    ln2g, ln2b = vec[6, :D], vec[7, :D]

    # ---- self attention: fused QKV projection over the whole (B*S, D) slab ----
    qkv = jnp.dot(x.astype(jnp.bfloat16), wqkv_ref[0],
                  preferred_element_type=jnp.float32) + bqkv          # (N, 3D) f32

    # Split heads onto a leading batch axis (lane slices + leading-axis stack:
    # cheap, no lane/sublane relayout transposes).
    heads = jnp.stack(
        [qkv[:, i * dh:(i + 1) * dh] for i in range(3 * n_heads)], axis=0)  # (3H, N, dh)
    q = heads[:n_heads].astype(jnp.bfloat16)                          # (H, N, dh)
    k = heads[n_heads:2 * n_heads].astype(jnp.bfloat16)
    v = heads[2 * n_heads:].astype(jnp.bfloat16)

    # Batched (per-head) scores over all B*S rows; the block-diagonal causal mask
    # keeps batches independent and enforces causality.
    s = jnp.einsum('hqd,hkd->hqk', q, k,
                   preferred_element_type=jnp.float32) * scale + mask_ref[...]
    s = s - jnp.max(s, axis=-1, keepdims=True)
    p = jnp.exp(s)
    p = p * pl.reciprocal(jnp.sum(p, axis=-1, keepdims=True), approx=True)
    ctx = jnp.einsum('hqk,hkd->hqd', p.astype(jnp.bfloat16), v,
                     preferred_element_type=jnp.float32)              # (H, N, dh)

    # Output projection: head-batched matmul summed over heads (== concat @ Wo^T),
    # avoids concatenating dh-wide lane chunks.
    attn = jnp.sum(
        jnp.einsum('hqd,hde->hqe', ctx.astype(jnp.bfloat16), wo_ref[0],
                   preferred_element_type=jnp.float32), axis=0) + bo  # (N, D)

    # residual + LayerNorm1 (dropout = identity in eval mode)
    x = x + attn
    mu = jnp.mean(x, axis=-1, keepdims=True)
    var = jnp.mean((x - mu) ** 2, axis=-1, keepdims=True)
    x = (x - mu) * jax.lax.rsqrt(var + 1e-5) * ln1g + ln1b

    # feed-forward (ReLU)
    h1 = jnp.dot(x.astype(jnp.bfloat16), w1_ref[0],
                 preferred_element_type=jnp.float32) + bf1
    h1 = jnp.maximum(h1, 0.0)
    ff = jnp.dot(h1.astype(jnp.bfloat16), w2_ref[0],
                 preferred_element_type=jnp.float32) + bf2

    # residual + LayerNorm2
    x = x + ff
    mu = jnp.mean(x, axis=-1, keepdims=True)
    var = jnp.mean((x - mu) ** 2, axis=-1, keepdims=True)
    x = (x - mu) * jax.lax.rsqrt(var + 1e-5) * ln2g + ln2b

    act_ref[...] = x

    # ---- final Linear(d_model -> vocab) + LogSoftmax, fused into the last step ----
    @pl.when(layer == n_layers - 1)
    def _():
        logits = jnp.dot(x.astype(jnp.bfloat16), wd_ref[...],
                         preferred_element_type=jnp.float32) + bd_ref[0]   # (N, Vp)
        m = jnp.max(logits, axis=-1, keepdims=True)
        z = logits - m
        lse = jnp.log(jnp.sum(jnp.exp(z), axis=-1, keepdims=True))
        o_ref[...] = (z - lse).astype(o_ref.dtype)


# ----------------------------------------------------------------------------- wrappers

def transformer_forward(tokens, params, packed, pe, mask_bd, *, n_heads):
    B, S = tokens.shape
    D = params["emb"].shape[1]
    V = params["wd_t"].shape[1]
    L = len(params["layers"])
    N = B * S
    dh = D // n_heads
    F = packed["w1"].shape[2]
    pad = packed["vec"].shape[2]
    Vp = packed["wd"].shape[1]

    # Embedding gather + sqrt(d_model) scale + positional-encoding add stay in
    # plain-JAX glue (table gather has no clean rectangular BlockSpec at this size).
    x0 = (params["emb"][tokens] * math.sqrt(D) + pe[None, :S, :]).reshape(N, D)
    x0 = x0.astype(jnp.float32)

    kernel = functools.partial(transformer_stack_kernel, n_heads)
    out = pl.pallas_call(
        kernel,
        out_shape=jax.ShapeDtypeStruct((N, Vp), jnp.float32),
        grid=(L,),
        in_specs=[
            pl.BlockSpec((N, D), lambda l: (0, 0)),                   # x0 (resident)
            pl.BlockSpec((N, N), lambda l: (0, 0)),                   # block-causal mask
            pl.BlockSpec((1, D, 3 * D), lambda l: (l, 0, 0)),         # Wqkv^T  (per layer)
            pl.BlockSpec((1, n_heads, dh, D), lambda l: (l, 0, 0, 0)),  # Wo^T per head
            pl.BlockSpec((1, D, F), lambda l: (l, 0, 0)),             # W1^T
            pl.BlockSpec((1, F, D), lambda l: (l, 0, 0)),             # W2^T
            pl.BlockSpec((1, 8, pad), lambda l: (l, 0, 0)),           # packed biases / LN
            pl.BlockSpec((D, Vp), lambda l: (0, 0)),                  # dense weight (resident)
            pl.BlockSpec((1, Vp), lambda l: (0, 0)),                  # dense bias
        ],
        out_specs=pl.BlockSpec((N, Vp), lambda l: (0, 0)),
        scratch_shapes=[pltpu.VMEM((N, D), jnp.float32)],
        compiler_params=pltpu.CompilerParams(
            dimension_semantics=("arbitrary",)),
    )(x0, mask_bd, packed["wqkv"], packed["wo"], packed["w1"], packed["w2"],
      packed["vec"], packed["wd"], packed["bd"])

    # un-pad vocab, restore PyTorch's (S, B, V) batch_first=False layout
    return out[:, :V].reshape(B, S, V).transpose(1, 0, 2)


def build_positional_encoding(seq_len, d_model):
    position = jnp.arange(seq_len, dtype=jnp.float32)[:, None]
    div_term = jnp.exp(jnp.arange(0, d_model, 2, dtype=jnp.float32)
                       * (-math.log(10000.0) / d_model))
    pe = jnp.zeros((seq_len, d_model), jnp.float32)
    pe = pe.at[:, 0::2].set(jnp.sin(position * div_term))
    pe = pe.at[:, 1::2].set(jnp.cos(position * div_term))
    return pe


def build_block_causal_mask(batch, seq_len):
    """Causal mask replicated block-diagonally over the flattened (B*S) rows."""
    n = batch * seq_len
    idx = jnp.arange(n)
    same_batch = (idx[:, None] // seq_len) == (idx[None, :] // seq_len)
    causal = (idx[None, :] % seq_len) <= (idx[:, None] % seq_len)
    return jnp.where(same_batch & causal, 0.0, NEG_INF).astype(jnp.float32)


def init_params(key, vocab_size, d_model, hidden, n_layers):
    keys = jax.random.split(key, 3 + n_layers)
    s_d = 1.0 / math.sqrt(d_model)
    s_h = 1.0 / math.sqrt(hidden)
    params = {
        "emb": jax.random.normal(keys[0], (vocab_size, d_model), jnp.float32),
        "wd_t": jax.random.normal(keys[1], (d_model, vocab_size), jnp.float32) * s_d,
        "bd": jax.random.normal(keys[2], (1, vocab_size), jnp.float32) * 0.01,
        "layers": [],
    }
    for l in range(n_layers):
        lk = jax.random.split(keys[3 + l], 8)
        params["layers"].append(dict(
            wqkv_t=jax.random.normal(lk[0], (d_model, 3 * d_model), jnp.float32) * s_d,
            bqkv=jax.random.normal(lk[1], (1, 3 * d_model), jnp.float32) * 0.01,
            wo_t=jax.random.normal(lk[2], (d_model, d_model), jnp.float32) * s_d,
            bo=jax.random.normal(lk[3], (1, d_model), jnp.float32) * 0.01,
            ln1_g=jnp.ones((1, d_model), jnp.float32),
            ln1_b=jnp.zeros((1, d_model), jnp.float32),
            w1_t=jax.random.normal(lk[4], (d_model, hidden), jnp.float32) * s_d,
            bf1=jax.random.normal(lk[5], (1, hidden), jnp.float32) * 0.01,
            w2_t=jax.random.normal(lk[6], (hidden, d_model), jnp.float32) * s_h,
            bf2=jax.random.normal(lk[7], (1, d_model), jnp.float32) * 0.01,
            ln2_g=jnp.ones((1, d_model), jnp.float32),
            ln2_b=jnp.zeros((1, d_model), jnp.float32),
        ))
    return params


def pack_for_kernel(params, n_heads):
    """Stack per-layer weights to (L, ...), cast matmul operands to bf16, pack the
    tiny bias/LayerNorm vectors into one lane-dense (L, 8, PAD) array and pad the
    vocab projection to a lane-dense width."""
    layers = params["layers"]
    D = params["emb"].shape[1]
    F = layers[0]["w1_t"].shape[1]
    dh = D // n_heads
    pad = _round_up(max(3 * D, F, D), 128)

    wqkv = jnp.stack([lp["wqkv_t"] for lp in layers]).astype(jnp.bfloat16)    # (L, D, 3D)
    wo = jnp.stack([lp["wo_t"].reshape(n_heads, dh, D) for lp in layers]
                   ).astype(jnp.bfloat16)                                     # (L, H, dh, D)
    w1 = jnp.stack([lp["w1_t"] for lp in layers]).astype(jnp.bfloat16)        # (L, D, F)
    w2 = jnp.stack([lp["w2_t"] for lp in layers]).astype(jnp.bfloat16)        # (L, F, D)

    def row(v):
        v = v.reshape(-1).astype(jnp.float32)
        return jnp.pad(v, (0, pad - v.shape[0]))

    vec = jnp.stack([
        jnp.stack([row(lp["bqkv"]), row(lp["bo"]), row(lp["bf1"]), row(lp["bf2"]),
                   row(lp["ln1_g"]), row(lp["ln1_b"]), row(lp["ln2_g"]), row(lp["ln2_b"])])
        for lp in layers])                                                    # (L, 8, pad)

    V = params["wd_t"].shape[1]
    Vp = _round_up(V, 128)
    wd = jnp.pad(params["wd_t"], ((0, 0), (0, Vp - V))).astype(jnp.bfloat16)  # (D, Vp)
    bd = jnp.pad(params["bd"].reshape(-1).astype(jnp.float32), (0, Vp - V),
                 constant_values=NEG_INF).reshape(1, Vp)                      # (1, Vp)

    return dict(wqkv=wqkv, wo=wo, w1=w1, w2=w2, vec=vec, wd=wd, bd=bd)


# ----------------------------------------------------------------------------- main

if __name__ == "__main__":
    vocab_size, d_model, hidden_size = 32, 32, 64
    n_heads, n_layers, seq_len = 4, 2, 8
    batch = 2

    key = jax.random.PRNGKey(0)
    pkey, tkey = jax.random.split(key)

    params = init_params(pkey, vocab_size, d_model, hidden_size, n_layers)
    packed = pack_for_kernel(params, n_heads)
    pe = build_positional_encoding(seq_len, d_model)
    mask_bd = build_block_causal_mask(batch, seq_len)
    tokens = jax.random.randint(tkey, (batch, seq_len), 0, vocab_size, dtype=jnp.int32)

    fwd = jax.jit(functools.partial(transformer_forward, n_heads=n_heads))
    out = fwd(tokens, params, packed, pe, mask_bd)
    out = jax.block_until_ready(out)

    assert out.shape == (seq_len, batch, vocab_size), out.shape
    assert out.dtype == jnp.float32
    # log-softmax rows should (log-)sum to ~0
    assert bool(jnp.all(jnp.abs(jax.scipy.special.logsumexp(out, axis=-1)) < 1e-3))
    print("KERNEL_OK")
</pallas_src>

<mosaic_0001>
module attributes {stable_mosaic.version = 11 : i64} {
  func.func @transformer_stack_kernel(%arg0: i32, %arg1: memref<16x32xf32, #tpu.memory_space<vmem>>, %arg2: memref<16x16xf32, #tpu.memory_space<vmem>>, %arg3: memref<1x32x96xbf16, #tpu.memory_space<vmem>>, %arg4: memref<1x4x8x32xbf16, #tpu.memory_space<vmem>>, %arg5: memref<1x32x64xbf16, #tpu.memory_space<vmem>>, %arg6: memref<1x64x32xbf16, #tpu.memory_space<vmem>>, %arg7: memref<1x8x128xf32, #tpu.memory_space<vmem>>, %arg8: memref<32x128xbf16, #tpu.memory_space<vmem>>, %arg9: memref<1x128xf32, #tpu.memory_space<vmem>>, %arg10: memref<16x128xf32, #tpu.memory_space<vmem>>, %arg11: memref<16x32xf32, #tpu.memory_space<vmem>>) attributes {dimension_semantics = [#tpu.dimension_semantics<arbitrary>], iteration_bounds = array<i64: 2>, scalar_prefetch = 0 : i64, scratch_operands = 1 : i64, tpu.core_type = #tpu.core_type<tc>, window_params = [{pipeline_mode = #tpu.pipeline_mode<synchronous>, transform_indices = @transform_0, window_bounds = array<i64: 16, 32>}, {pipeline_mode = #tpu.pipeline_mode<synchronous>, transform_indices = @transform_1, window_bounds = array<i64: 16, 16>}, {transform_indices = @transform_2, window_bounds = array<i64: 1, 32, 96>}, {transform_indices = @transform_3, window_bounds = array<i64: 1, 4, 8, 32>}, {transform_indices = @transform_4, window_bounds = array<i64: 1, 32, 64>}, {transform_indices = @transform_5, window_bounds = array<i64: 1, 64, 32>}, {transform_indices = @transform_6, window_bounds = array<i64: 1, 8, 128>}, {pipeline_mode = #tpu.pipeline_mode<synchronous>, transform_indices = @transform_7, window_bounds = array<i64: 32, 128>}, {pipeline_mode = #tpu.pipeline_mode<synchronous>, transform_indices = @transform_8, window_bounds = array<i64: 1, 128>}, {pipeline_mode = #tpu.pipeline_mode<synchronous>, transform_indices = @transform_9, window_bounds = array<i64: 16, 128>}]} {
    %c0_i32 = arith.constant 0 : i32
    %0 = arith.cmpi eq, %arg0, %c0_i32 : i32
    %1 = arith.extui %0 : i1 to i32
    %c0_i32_0 = arith.constant 0 : i32
    %2 = arith.cmpi ne, %1, %c0_i32_0 : i32
    scf.if %2 {
      %c0_43 = arith.constant 0 : index
      %c0_44 = arith.constant 0 : index
      %157 = vector.load %arg1[%c0_43, %c0_44] : memref<16x32xf32, #tpu.memory_space<vmem>>, vector<16x32xf32>
      %c0_45 = arith.constant 0 : index
      %c0_46 = arith.constant 0 : index
      %158 = vector.load %arg11[%c0_45, %c0_46] : memref<16x32xf32, #tpu.memory_space<vmem>>, vector<16x32xf32>
      tpu.vector_store %arg11[%c0_45, %c0_46], %157 {strides = array<i32>} : memref<16x32xf32, #tpu.memory_space<vmem>>, vector<16x32xf32>,
    } else {
    }
    %c0 = arith.constant 0 : index
    %c0_1 = arith.constant 0 : index
    %3 = vector.load %arg11[%c0, %c0_1] : memref<16x32xf32, #tpu.memory_space<vmem>>, vector<16x32xf32>
    %c0_2 = arith.constant 0 : index
    %c0_3 = arith.constant 0 : index
    %c0_4 = arith.constant 0 : index
    %4 = vector.load %arg7[%c0_2, %c0_3, %c0_4] : memref<1x8x128xf32, #tpu.memory_space<vmem>>, vector<1x8x128xf32>
    %5 = vector.shape_cast %4 : vector<1x8x128xf32> to vector<8x128xf32>
    %6 = vector.extract_strided_slice %5 {offsets = [0, 0], sizes = [1, 96], strides = [1, 1]} : vector<8x128xf32> to vector<1x96xf32>
    %7 = vector.shape_cast %6 : vector<1x96xf32> to vector<96xf32>
    %8 = vector.extract_strided_slice %5 {offsets = [1, 0], sizes = [1, 32], strides = [1, 1]} : vector<8x128xf32> to vector<1x32xf32>
    %9 = vector.shape_cast %8 : vector<1x32xf32> to vector<32xf32>
    %10 = vector.extract_strided_slice %5 {offsets = [2, 0], sizes = [1, 64], strides = [1, 1]} : vector<8x128xf32> to vector<1x64xf32>
    %11 = vector.shape_cast %10 : vector<1x64xf32> to vector<64xf32>
    %12 = vector.extract_strided_slice %5 {offsets = [3, 0], sizes = [1, 32], strides = [1, 1]} : vector<8x128xf32> to vector<1x32xf32>
    %13 = vector.shape_cast %12 : vector<1x32xf32> to vector<32xf32>
    %14 = vector.extract_strided_slice %5 {offsets = [4, 0], sizes = [1, 32], strides = [1, 1]} : vector<8x128xf32> to vector<1x32xf32>
    %15 = vector.shape_cast %14 : vector<1x32xf32> to vector<32xf32>
    %16 = vector.extract_strided_slice %5 {offsets = [5, 0], sizes = [1, 32], strides = [1, 1]} : vector<8x128xf32> to vector<1x32xf32>
    %17 = vector.shape_cast %16 : vector<1x32xf32> to vector<32xf32>
    %18 = vector.extract_strided_slice %5 {offsets = [6, 0], sizes = [1, 32], strides = [1, 1]} : vector<8x128xf32> to vector<1x32xf32>
    %19 = vector.shape_cast %18 : vector<1x32xf32> to vector<32xf32>
    %20 = vector.extract_strided_slice %5 {offsets = [7, 0], sizes = [1, 32], strides = [1, 1]} : vector<8x128xf32> to vector<1x32xf32>
    %21 = vector.shape_cast %20 : vector<1x32xf32> to vector<32xf32>
    %22 = arith.truncf %3 : vector<16x32xf32> to vector<16x32xbf16>
    %c0_5 = arith.constant 0 : index
    %c0_6 = arith.constant 0 : index
    %c0_7 = arith.constant 0 : index
    %23 = vector.load %arg3[%c0_5, %c0_6, %c0_7] : memref<1x32x96xbf16, #tpu.memory_space<vmem>>, vector<1x32x96xbf16>
    %24 = vector.shape_cast %23 : vector<1x32x96xbf16> to vector<32x96xbf16>
    %cst = arith.constant dense<0.000000e+00> : vector<16x96xf32>
    %25 = tpu.matmul %22, %24, %cst {dimension_numbers = #tpu.dot_dimension_numbers<[1], [0], [0], [1], [0, 0, 1, 1], [], []>} : vector<16x32xbf16>, vector<32x96xbf16>, vector<16x96xf32> -> vector<16x96xf32>
    %26 = vector.shape_cast %7 : vector<96xf32> to vector<1x96xf32>
    %27 = vector.broadcast %26 : vector<1x96xf32> to vector<16x96xf32>
    %28 = arith.addf %25, %27 : vector<16x96xf32>
    %29 = vector.extract_strided_slice %28 {offsets = [0, 0], sizes = [16, 8], strides = [1, 1]} : vector<16x96xf32> to vector<16x8xf32>
    %30 = vector.extract_strided_slice %28 {offsets = [0, 8], sizes = [16, 8], strides = [1, 1]} : vector<16x96xf32> to vector<16x8xf32>
    %31 = vector.extract_strided_slice %28 {offsets = [0, 16], sizes = [16, 8], strides = [1, 1]} : vector<16x96xf32> to vector<16x8xf32>
    %32 = vector.extract_strided_slice %28 {offsets = [0, 24], sizes = [16, 8], strides = [1, 1]} : vector<16x96xf32> to vector<16x8xf32>
    %33 = vector.extract_strided_slice %28 {offsets = [0, 32], sizes = [16, 8], strides = [1, 1]} : vector<16x96xf32> to vector<16x8xf32>
    %34 = vector.extract_strided_slice %28 {offsets = [0, 40], sizes = [16, 8], strides = [1, 1]} : vector<16x96xf32> to vector<16x8xf32>
    %35 = vector.extract_strided_slice %28 {offsets = [0, 48], sizes = [16, 8], strides = [1, 1]} : vector<16x96xf32> to vector<16x8xf32>
    %36 = vector.extract_strided_slice %28 {offsets = [0, 56], sizes = [16, 8], strides = [1, 1]} : vector<16x96xf32> to vector<16x8xf32>
    %37 = vector.extract_strided_slice %28 {offsets = [0, 64], sizes = [16, 8], strides = [1, 1]} : vector<16x96xf32> to vector<16x8xf32>
    %38 = vector.extract_strided_slice %28 {offsets = [0, 72], sizes = [16, 8], strides = [1, 1]} : vector<16x96xf32> to vector<16x8xf32>
    %39 = vector.extract_strided_slice %28 {offsets = [0, 80], sizes = [16, 8], strides = [1, 1]} : vector<16x96xf32> to vector<16x8xf32>
    %40 = vector.extract_strided_slice %28 {offsets = [0, 88], sizes = [16, 8], strides = [1, 1]} : vector<16x96xf32> to vector<16x8xf32>
    %41 = vector.shape_cast %29 : vector<16x8xf32> to vector<1x16x8xf32>
    %42 = vector.shape_cast %30 : vector<16x8xf32> to vector<1x16x8xf32>
    %43 = vector.shape_cast %31 : vector<16x8xf32> to vector<1x16x8xf32>
    %44 = vector.shape_cast %32 : vector<16x8xf32> to vector<1x16x8xf32>
    %45 = vector.shape_cast %33 : vector<16x8xf32> to vector<1x16x8xf32>
    %46 = vector.shape_cast %34 : vector<16x8xf32> to vector<1x16x8xf32>
    %47 = vector.shape_cast %35 : vector<16x8xf32> to vector<1x16x8xf32>
    %48 = vector.shape_cast %36 : vector<16x8xf32> to vector<1x16x8xf32>
    %49 = vector.shape_cast %37 : vector<16x8xf32> to vector<1x16x8xf32>
    %50 = vector.shape_cast %38 : vector<16x8xf32> to vector<1x16x8xf32>
    %51 = vector.shape_cast %39 : vector<16x8xf32> to vector<1x16x8xf32>
    %52 = vector.shape_cast %40 : vector<16x8xf32> to vector<1x16x8xf32>
    %53 = tpu.concatenate %41, %42, %43, %44, %45, %46, %47, %48, %49, %50, %51, %52 in 0 : vector<1x16x8xf32>, vector<1x16x8xf32>, vector<1x16x8xf32>, vector<1x16x8xf32>, vector<1x16x8xf32>, vector<1x16x8xf32>, vector<1x16x8xf32>, vector<1x16x8xf32>, vector<1x16x8xf32>, vector<1x16x8xf32>, vector<1x16x8xf32>, vector<1x16x8xf32> -> vector<12x16x8xf32>
    %54 = vector.extract_strided_slice %53 {offsets = [0, 0, 0], sizes = [4, 16, 8], strides = [1, 1, 1]} : vector<12x16x8xf32> to vector<4x16x8xf32>
    %55 = arith.truncf %54 : vector<4x16x8xf32> to vector<4x16x8xbf16>
    %56 = vector.extract_strided_slice %53 {offsets = [4, 0, 0], sizes = [4, 16, 8], strides = [1, 1, 1]} : vector<12x16x8xf32> to vector<4x16x8xf32>
    %57 = arith.truncf %56 : vector<4x16x8xf32> to vector<4x16x8xbf16>
    %58 = vector.extract_strided_slice %53 {offsets = [8, 0, 0], sizes = [4, 16, 8], strides = [1, 1, 1]} : vector<12x16x8xf32> to vector<4x16x8xf32>
    %59 = arith.truncf %58 : vector<4x16x8xf32> to vector<4x16x8xbf16>
    "tpu.trace_start"() <{level = 10 : i32, message = "hqd,hkd->hqk"}> : () -> ()
    %cst_8 = arith.constant dense<0.000000e+00> : vector<4x16x16xf32>
    %60 = tpu.matmul %55, %57, %cst_8 {dimension_numbers = #tpu.dot_dimension_numbers<[2], [2], [1], [1], [0, 0, 0, 1, 1, 1], [0], [0]>} : vector<4x16x8xbf16>, vector<4x16x8xbf16>, vector<4x16x16xf32> -> vector<4x16x16xf32>
    "tpu.trace_stop"() : () -> ()
    %cst_9 = arith.constant 0.353553385 : f32
    %61 = vector.broadcast %cst_9 : f32 to vector<4x16x16xf32>
    %62 = arith.mulf %60, %61 : vector<4x16x16xf32>
    %c0_10 = arith.constant 0 : index
    %c0_11 = arith.constant 0 : index
    %63 = vector.load %arg2[%c0_10, %c0_11] : memref<16x16xf32, #tpu.memory_space<vmem>>, vector<16x16xf32>
    %64 = vector.shape_cast %63 : vector<16x16xf32> to vector<1x16x16xf32>
    %65 = vector.broadcast %64 : vector<1x16x16xf32> to vector<4x16x16xf32>
    %66 = arith.addf %62, %65 : vector<4x16x16xf32>
    %cst_12 = arith.constant dense<0xFF800000> : vector<4x16xf32>
    %67 = vector.multi_reduction <maximumf>, %66, %cst_12 [2] : vector<4x16x16xf32> to vector<4x16xf32>
    %68 = vector.shape_cast %67 : vector<4x16xf32> to vector<4x16x1xf32>
    %69 = vector.broadcast %68 : vector<4x16x1xf32> to vector<4x16x16xf32>
    %70 = arith.subf %66, %69 : vector<4x16x16xf32>
    %71 = math.exp %70 : vector<4x16x16xf32>
    %cst_13 = arith.constant dense<0.000000e+00> : vector<4x16xf32>
    %72 = vector.multi_reduction <add>, %71, %cst_13 [2] : vector<4x16x16xf32> to vector<4x16xf32>
    %73 = vector.shape_cast %72 : vector<4x16xf32> to vector<4x16x1xf32>
    %74 = tpu.reciprocal %73 {approx = true} : vector<4x16x1xf32> -> vector<4x16x1xf32>
    %75 = vector.broadcast %74 : vector<4x16x1xf32> to vector<4x16x16xf32>
    %76 = arith.mulf %71, %75 : vector<4x16x16xf32>
    %77 = arith.truncf %76 : vector<4x16x16xf32> to vector<4x16x16xbf16>
    "tpu.trace_start"() <{level = 10 : i32, message = "hqk,hkd->hqd"}> : () -> ()
    %cst_14 = arith.constant dense<0.000000e+00> : vector<4x16x8xf32>
    %78 = tpu.matmul %77, %59, %cst_14 {dimension_numbers = #tpu.dot_dimension_numbers<[2], [1], [1], [2], [0, 0, 0, 1, 1, 2], [0], [0]>} : vector<4x16x16xbf16>, vector<4x16x8xbf16>, vector<4x16x8xf32> -> vector<4x16x8xf32>
    "tpu.trace_stop"() : () -> ()
    %79 = arith.truncf %78 : vector<4x16x8xf32> to vector<4x16x8xbf16>
    %c0_15 = arith.constant 0 : index
    %c0_16 = arith.constant 0 : index
    %c0_17 = arith.constant 0 : index
    %c0_18 = arith.constant 0 : index
    %80 = vector.load %arg4[%c0_15, %c0_16, %c0_17, %c0_18] : memref<1x4x8x32xbf16, #tpu.memory_space<vmem>>, vector<1x4x8x32xbf16>
    %81 = vector.shape_cast %80 : vector<1x4x8x32xbf16> to vector<4x8x32xbf16>
    "tpu.trace_start"() <{level = 10 : i32, message = "hqd,hde->hqe"}> : () -> ()
    %cst_19 = arith.constant dense<0.000000e+00> : vector<4x16x32xf32>
    %82 = tpu.matmul %79, %81, %cst_19 {dimension_numbers = #tpu.dot_dimension_numbers<[2], [1], [1], [2], [0, 0, 0, 1, 1, 2], [0], [0]>} : vector<4x16x8xbf16>, vector<4x8x32xbf16>, vector<4x16x32xf32> -> vector<4x16x32xf32>
    "tpu.trace_stop"() : () -> ()
    %cst_20 = arith.constant dense<0.000000e+00> : vector<16x32xf32>
    %83 = vector.multi_reduction <add>, %82, %cst_20 [0] : vector<4x16x32xf32> to vector<16x32xf32>
    %84 = vector.shape_cast %9 : vector<32xf32> to vector<1x32xf32>
    %85 = vector.broadcast %84 : vector<1x32xf32> to vector<16x32xf32>
    %86 = arith.addf %83, %85 : vector<16x32xf32>
    %87 = arith.addf %3, %86 : vector<16x32xf32>
    %cst_21 = arith.constant dense<0.000000e+00> : vector<16xf32>
    %88 = vector.multi_reduction <add>, %87, %cst_21 [1] : vector<16x32xf32> to vector<16xf32>
    %89 = vector.shape_cast %88 : vector<16xf32> to vector<16x1xf32>
    %cst_22 = arith.constant 3.200000e+01 : f32
    %90 = vector.broadcast %cst_22 : f32 to vector<16x1xf32>
    %91 = arith.divf %89, %90 : vector<16x1xf32>
    %92 = vector.broadcast %91 : vector<16x1xf32> to vector<16x32xf32>
    %93 = arith.subf %87, %92 : vector<16x32xf32>
    %94 = arith.mulf %93, %93 : vector<16x32xf32>
    %cst_23 = arith.constant dense<0.000000e+00> : vector<16xf32>
    %95 = vector.multi_reduction <add>, %94, %cst_23 [1] : vector<16x32xf32> to vector<16xf32>
    %96 = vector.shape_cast %95 : vector<16xf32> to vector<16x1xf32>
    %cst_24 = arith.constant 3.200000e+01 : f32
    %97 = vector.broadcast %cst_24 : f32 to vector<16x1xf32>
    %98 = arith.divf %96, %97 : vector<16x1xf32>
    %99 = vector.broadcast %91 : vector<16x1xf32> to vector<16x32xf32>
    %100 = arith.subf %87, %99 : vector<16x32xf32>
    %cst_25 = arith.constant 9.99999974E-6 : f32
    %101 = vector.broadcast %cst_25 : f32 to vector<16x1xf32>
    %102 = arith.addf %98, %101 : vector<16x1xf32>
    %103 = math.rsqrt %102 : vector<16x1xf32>
    %104 = vector.broadcast %103 : vector<16x1xf32> to vector<16x32xf32>
    %105 = arith.mulf %100, %104 : vector<16x32xf32>
    %106 = vector.shape_cast %15 : vector<32xf32> to vector<1x32xf32>
    %107 = vector.broadcast %106 : vector<1x32xf32> to vector<16x32xf32>
    %108 = arith.mulf %105, %107 : vector<16x32xf32>
    %109 = vector.shape_cast %17 : vector<32xf32> to vector<1x32xf32>
    %110 = vector.broadcast %109 : vector<1x32xf32> to vector<16x32xf32>
    %111 = arith.addf %108, %110 : vector<16x32xf32>
    %112 = arith.truncf %111 : vector<16x32xf32> to vector<16x32xbf16>
    %c0_26 = arith.constant 0 : index
    %c0_27 = arith.constant 0 : index
    %c0_28 = arith.constant 0 : index
    %113 = vector.load %arg5[%c0_26, %c0_27, %c0_28] : memref<1x32x64xbf16, #tpu.memory_space<vmem>>, vector<1x32x64xbf16>
    %114 = vector.shape_cast %113 : vector<1x32x64xbf16> to vector<32x64xbf16>
    %cst_29 = arith.constant dense<0.000000e+00> : vector<16x64xf32>
    %115 = tpu.matmul %112, %114, %cst_29 {dimension_numbers = #tpu.dot_dimension_numbers<[1], [0], [0], [1], [0, 0, 1, 1], [], []>} : vector<16x32xbf16>, vector<32x64xbf16>, vector<16x64xf32> -> vector<16x64xf32>
    %116 = vector.shape_cast %11 : vector<64xf32> to vector<1x64xf32>
    %117 = vector.broadcast %116 : vector<1x64xf32> to vector<16x64xf32>
    %118 = arith.addf %115, %117 : vector<16x64xf32>
    %cst_30 = arith.constant 0.000000e+00 : f32
    %119 = vector.broadcast %cst_30 : f32 to vector<16x64xf32>
    %120 = arith.maximumf %118, %119 : vector<16x64xf32>
    %121 = arith.truncf %120 : vector<16x64xf32> to vector<16x64xbf16>
    %c0_31 = arith.constant 0 : index
    %c0_32 = arith.constant 0 : index
    %c0_33 = arith.constant 0 : index
    %122 = vector.load %arg6[%c0_31, %c0_32, %c0_33] : memref<1x64x32xbf16, #tpu.memory_space<vmem>>, vector<1x64x32xbf16>
    %123 = vector.shape_cast %122 : vector<1x64x32xbf16> to vector<64x32xbf16>
    %cst_34 = arith.constant dense<0.000000e+00> : vector<16x32xf32>
    %124 = tpu.matmul %121, %123, %cst_34 {dimension_numbers = #tpu.dot_dimension_numbers<[1], [0], [0], [1], [0, 0, 1, 1], [], []>} : vector<16x64xbf16>, vector<64x32xbf16>, vector<16x32xf32> -> vector<16x32xf32>
    %125 = vector.shape_cast %13 : vector<32xf32> to vector<1x32xf32>
    %126 = vector.broadcast %125 : vector<1x32xf32> to vector<16x32xf32>
    %127 = arith.addf %124, %126 : vector<16x32xf32>
    %128 = arith.addf %111, %127 : vector<16x32xf32>
    %cst_35 = arith.constant dense<0.000000e+00> : vector<16xf32>
    %129 = vector.multi_reduction <add>, %128, %cst_35 [1] : vector<16x32xf32> to vector<16xf32>
    %130 = vector.shape_cast %129 : vector<16xf32> to vector<16x1xf32>
    %cst_36 = arith.constant 3.200000e+01 : f32
    %131 = vector.broadcast %cst_36 : f32 to vector<16x1xf32>
    %132 = arith.divf %130, %131 : vector<16x1xf32>
    %133 = vector.broadcast %132 : vector<16x1xf32> to vector<16x32xf32>
    %134 = arith.subf %128, %133 : vector<16x32xf32>
    %135 = arith.mulf %134, %134 : vector<16x32xf32>
    %cst_37 = arith.constant dense<0.000000e+00> : vector<16xf32>
    %136 = vector.multi_reduction <add>, %135, %cst_37 [1] : vector<16x32xf32> to vector<16xf32>
    %137 = vector.shape_cast %136 : vector<16xf32> to vector<16x1xf32>
    %cst_38 = arith.constant 3.200000e+01 : f32
    %138 = vector.broadcast %cst_38 : f32 to vector<16x1xf32>
    %139 = arith.divf %137, %138 : vector<16x1xf32>
    %140 = vector.broadcast %132 : vector<16x1xf32> to vector<16x32xf32>
    %141 = arith.subf %128, %140 : vector<16x32xf32>
    %cst_39 = arith.constant 9.99999974E-6 : f32
    %142 = vector.broadcast %cst_39 : f32 to vector<16x1xf32>
    %143 = arith.addf %139, %142 : vector<16x1xf32>
    %144 = math.rsqrt %143 : vector<16x1xf32>
    %145 = vector.broadcast %144 : vector<16x1xf32> to vector<16x32xf32>
    %146 = arith.mulf %141, %145 : vector<16x32xf32>
    %147 = vector.shape_cast %19 : vector<32xf32> to vector<1x32xf32>
    %148 = vector.broadcast %147 : vector<1x32xf32> to vector<16x32xf32>
    %149 = arith.mulf %146, %148 : vector<16x32xf32>
    %150 = vector.shape_cast %21 : vector<32xf32> to vector<1x32xf32>
    %151 = vector.broadcast %150 : vector<1x32xf32> to vector<16x32xf32>
    %152 = arith.addf %149, %151 : vector<16x32xf32>
    %c0_40 = arith.constant 0 : index
    %c0_41 = arith.constant 0 : index
    %153 = vector.load %arg11[%c0_40, %c0_41] : memref<16x32xf32, #tpu.memory_space<vmem>>, vector<16x32xf32>
    tpu.vector_store %arg11[%c0_40, %c0_41], %152 {strides = array<i32>} : memref<16x32xf32, #tpu.memory_space<vmem>>, vector<16x32xf32>,
    %c1_i32 = arith.constant 1 : i32
    %154 = arith.cmpi eq, %arg0, %c1_i32 : i32
    %155 = arith.extui %154 : i1 to i32
    %c0_i32_42 = arith.constant 0 : i32
    %156 = arith.cmpi ne, %155, %c0_i32_42 : i32
    scf.if %156 {
      %157 = arith.truncf %152 : vector<16x32xf32> to vector<16x32xbf16>
      %c0_43 = arith.constant 0 : index
      %c0_44 = arith.constant 0 : index
      %158 = vector.load %arg8[%c0_43, %c0_44] : memref<32x128xbf16, #tpu.memory_space<vmem>>, vector<32x128xbf16>
      %cst_45 = arith.constant dense<0.000000e+00> : vector<16x128xf32>
      %159 = tpu.matmul %157, %158, %cst_45 {dimension_numbers = #tpu.dot_dimension_numbers<[1], [0], [0], [1], [0, 0, 1, 1], [], []>} : vector<16x32xbf16>, vector<32x128xbf16>, vector<16x128xf32> -> vector<16x128xf32>
      %c0_46 = arith.constant 0 : index
      %c0_47 = arith.constant 0 : index
      %160 = vector.load %arg9[%c0_46, %c0_47] : memref<1x128xf32, #tpu.memory_space<vmem>>, vector<1x128xf32>
      %161 = vector.shape_cast %160 : vector<1x128xf32> to vector<128xf32>
      %162 = vector.shape_cast %161 : vector<128xf32> to vector<1x128xf32>
      %163 = vector.broadcast %162 : vector<1x128xf32> to vector<16x128xf32>
      %164 = arith.addf %159, %163 : vector<16x128xf32>
      %cst_48 = arith.constant dense<0xFF800000> : vector<16xf32>
      %165 = vector.multi_reduction <maximumf>, %164, %cst_48 [1] : vector<16x128xf32> to vector<16xf32>
      %166 = vector.shape_cast %165 : vector<16xf32> to vector<16x1xf32>
      %167 = vector.broadcast %166 : vector<16x1xf32> to vector<16x128xf32>
      %168 = arith.subf %164, %167 : vector<16x128xf32>
      %169 = math.exp %168 : vector<16x128xf32>
      %cst_49 = arith.constant dense<0.000000e+00> : vector<16xf32>
      %170 = vector.multi_reduction <add>, %169, %cst_49 [1] : vector<16x128xf32> to vector<16xf32>
      %171 = vector.shape_cast %170 : vector<16xf32> to vector<16x1xf32>
      %172 = math.log %171 : vector<16x1xf32>
      %173 = vector.broadcast %172 : vector<16x1xf32> to vector<16x128xf32>
      %174 = arith.subf %168, %173 : vector<16x128xf32>
      %c0_50 = arith.constant 0 : index
      %c0_51 = arith.constant 0 : index
      %175 = vector.load %arg10[%c0_50, %c0_51] : memref<16x128xf32, #tpu.memory_space<vmem>>, vector<16x128xf32>
      tpu.vector_store %arg10[%c0_50, %c0_51], %174 {strides = array<i32>} : memref<16x128xf32, #tpu.memory_space<vmem>>, vector<16x128xf32>,
    } else {
    }
    return
  }
  func.func @transform_0(%arg0: i32) -> (i32, i32) {
    %c0_i32 = arith.constant 0 : i32
    %c0_i32_0 = arith.constant 0 : i32
    %c0_i32_1 = arith.constant 0 : i32
    return %c0_i32, %c0_i32_0 : i32, i32
  }
  func.func @transform_1(%arg0: i32) -> (i32, i32) {
    %c0_i32 = arith.constant 0 : i32
    %c0_i32_0 = arith.constant 0 : i32
    %c0_i32_1 = arith.constant 0 : i32
    return %c0_i32, %c0_i32_0 : i32, i32
  }
  func.func @transform_2(%arg0: i32) -> (i32, i32, i32) {
    %c0_i32 = arith.constant 0 : i32
    %c0_i32_0 = arith.constant 0 : i32
    %c0_i32_1 = arith.constant 0 : i32
    return %arg0, %c0_i32, %c0_i32_0 : i32, i32, i32
  }
  func.func @transform_3(%arg0: i32) -> (i32, i32, i32, i32) {
    %c0_i32 = arith.constant 0 : i32
    %c0_i32_0 = arith.constant 0 : i32
    %c0_i32_1 = arith.constant 0 : i32
    %c0_i32_2 = arith.constant 0 : i32
    return %arg0, %c0_i32, %c0_i32_0, %c0_i32_1 : i32, i32, i32, i32
  }
  func.func @transform_4(%arg0: i32) -> (i32, i32, i32) {
    %c0_i32 = arith.constant 0 : i32
    %c0_i32_0 = arith.constant 0 : i32
    %c0_i32_1 = arith.constant 0 : i32
    return %arg0, %c0_i32, %c0_i32_0 : i32, i32, i32
  }
  func.func @transform_5(%arg0: i32) -> (i32, i32, i32) {
    %c0_i32 = arith.constant 0 : i32
    %c0_i32_0 = arith.constant 0 : i32
    %c0_i32_1 = arith.constant 0 : i32
    return %arg0, %c0_i32, %c0_i32_0 : i32, i32, i32
  }
  func.func @transform_6(%arg0: i32) -> (i32, i32, i32) {
    %c0_i32 = arith.constant 0 : i32
    %c0_i32_0 = arith.constant 0 : i32
    %c0_i32_1 = arith.constant 0 : i32
    return %arg0, %c0_i32, %c0_i32_0 : i32, i32, i32
  }
  func.func @transform_7(%arg0: i32) -> (i32, i32) {
    %c0_i32 = arith.constant 0 : i32
    %c0_i32_0 = arith.constant 0 : i32
    %c0_i32_1 = arith.constant 0 : i32
    return %c0_i32, %c0_i32_0 : i32, i32
  }
  func.func @transform_8(%arg0: i32) -> (i32, i32) {
    %c0_i32 = arith.constant 0 : i32
    %c0_i32_0 = arith.constant 0 : i32
    %c0_i32_1 = arith.constant 0 : i32
    return %c0_i32, %c0_i32_0 : i32, i32
  }
  func.func @transform_9(%arg0: i32) -> (i32, i32) {
    %c0_i32 = arith.constant 0 : i32
    %c0_i32_0 = arith.constant 0 : i32
    %c0_i32_1 = arith.constant 0 : i32
    return %c0_i32, %c0_i32_0 : i32, i32
  }
}

</mosaic_0001>

<llo_original>
// kernel: transformer_forward.1
$region0: #{transformer_forward.1}
  #allocation0 [shape = 'u32[]', space=smem, size = 0x4, offset = 0x4, fixed_abs, tag = 'smem constant byte address 0x4 - core index']
  #allocation1 [shape = 'u32[144,128]{1,0:T(1,128)}', space=vmem, size = 0x12000, scoped, tag = 'internal scratch']
  #allocation2 [shape = 'f32[16,32]{1,0:T(8,128)}', space=vmem, size = 0x2000, scoped, tag = 'scratch operand']
  %s0 = inlined_call_operand.vmem [shape: f32[16,32], index: 0, kind: input, shape index: {}]
  %s1 = inlined_call_operand.vmem [shape: f32[16,16], index: 1, kind: input, shape index: {}]
  %s2 = inlined_call_operand.vmem [shape: bf16[2,32,96], index: 2, kind: input, shape index: {}]
  %s3 = inlined_call_operand.vmem [shape: bf16[2,4,8,32], index: 3, kind: input, shape index: {}]
  %s4 = inlined_call_operand.vmem [shape: bf16[2,32,64], index: 4, kind: input, shape index: {}]
  %s5 = inlined_call_operand.vmem [shape: bf16[2,64,32], index: 5, kind: input, shape index: {}]
  %s6 = inlined_call_operand.vmem [shape: f32[2,8,128], index: 6, kind: input, shape index: {}]
  %s7 = inlined_call_operand.vmem [shape: bf16[32,128], index: 7, kind: input, shape index: {}]
  %s8 = inlined_call_operand.vmem [shape: f32[1,128], index: 8, kind: input, shape index: {}]
  %s9 = inlined_call_operand.vmem [shape: f32[16,128], index: 9, kind: output, shape index: {}]
  %s10 = sld [smem:[#allocation0]]
  $region77: #{transformer_forward.1} parent=0
    _
  %s12 = ssub.s32 1, %s10
  %s13 = scalar_select 0, %s12, %s10
  loop: start=0, step=1, limit=4
  $region2: #{transformer_forward.1} parent=0 // loop_pre_header
    _
  $region3: #{transformer_forward.1} parent=0 // loop_header
    %s15 = sphi 0, %s19
    %p16 = scmp.ge.s32.totalorder %s15, 4
    %s23 = sphi 0, %s23
    %s25 = sphi 0, %s23
    %s26 = sphi 0, %s25
    %s40 = sphi 0, %s26
    %s44 = sphi 0, %s44
    %s46 = sphi 0, %s44
    %s47 = sphi 0, %s46
    %s61 = sphi 0, %s47
    %s67 = sphi 0, %s69
    %s70 = sphi 0, %s67
    %s71 = sphi 0, %s70
    %s87 = sphi 0, %s71
    %s93 = sphi 0, %s95
    %s96 = sphi 0, %s93
    %s97 = sphi 0, %s96
    %s113 = sphi 0, %s97
    %s119 = sphi 0, %s121
    %s122 = sphi 0, %s119
    %s123 = sphi 0, %s122
    %s139 = sphi 0, %s123
    %s145 = sphi 0, %s147
    %s148 = sphi 0, %s145
    %s149 = sphi 0, %s148
    %s165 = sphi 0, %s149
    %s171 = sphi 0, %s173
    %s174 = sphi 0, %s171
    %s175 = sphi 0, %s174
    %s191 = sphi 0, %s175
    %s195 = sphi 0, %s195
    %s197 = sphi 0, %s195
    %s198 = sphi 0, %s197
    %s212 = sphi 0, %s198
    %s216 = sphi 0, %s216
    %s218 = sphi 0, %s216
    %s219 = sphi 0, %s218
    %s233 = sphi 0, %s219
    %s237 = sphi 0, %s237
    %s239 = sphi 0, %s237
    %s240 = sphi 0, %s239
    %s254 = sphi 0, %s240
  $region4: #{transformer_forward.1} parent=0 // loop_header_branch
    %18 = sbr.rel (%p16) target = $region8
  $region5: #{transformer_forward.1} parent=0 // loop_body
    %s20 = ssub.s32 %s15, 1
    %s21 = ssub.s32 %s15, 2
    %s22 = sadd.s32 %s15, 1
    %s24 = sadd.s32 %s23, 1
    %p27 = scmp.eq.s32.totalorder %s15, 1
    %p28 = scmp.ne.s32.totalorder %s23, %s25
    %p29 = scmp.eq.s32.totalorder %s15, 0
    %p30 = por %p28, %p29
    %p31 = scmp.ne.s32.totalorder %s23, %s25
    %p32 = scmp.eq.s32.totalorder %s20, 1
    %p33 = por %p31, %p32
    %p34 = scmp.ne.s32.totalorder %s25, %s26
    %p35 = scmp.eq.s32.totalorder %s20, 0
    %p36 = por %p34, %p35
    %p37 = scmp.ne.s32.totalorder %s25, %s26
    %p38 = scmp.eq.s32.totalorder %s21, 1
    %p39 = por %p37, %p38
    %p41 = scmp.ne.s32.totalorder %s26, %s40
    %p42 = scmp.eq.s32.totalorder %s21, 0
    %p43 = por %p41, %p42
    %s45 = sadd.s32 %s44, 1
    %p48 = scmp.eq.s32.totalorder %s15, 1
    %p49 = scmp.ne.s32.totalorder %s44, %s46
    %p50 = scmp.eq.s32.totalorder %s15, 0
    %p51 = por %p49, %p50
    %p52 = scmp.ne.s32.totalorder %s44, %s46
    %p53 = scmp.eq.s32.totalorder %s20, 1
    %p54 = por %p52, %p53
    %p55 = scmp.ne.s32.totalorder %s46, %s47
    %p56 = scmp.eq.s32.totalorder %s20, 0
    %p57 = por %p55, %p56
    %p58 = scmp.ne.s32.totalorder %s46, %s47
    %p59 = scmp.eq.s32.totalorder %s21, 1
    %p60 = por %p58, %p59
    %p62 = scmp.ne.s32.totalorder %s47, %s61
    %p63 = scmp.eq.s32.totalorder %s21, 0
    %p64 = por %p62, %p63
    %s65 = ssub.s32 %s15, %s22
    %p66 = scmp.eq.s32.totalorder %s65, 0
    %s68 = sadd.s32 %s67, 1
    %s69 = scalar_select %p66, %s67, %s68
    %p72 = pneg %p66
    %p73 = scmp.eq.s32.totalorder %s15, 1
    %p74 = por %p72, %p73
    %p75 = scmp.ne.s32.totalorder %s67, %s70
    %p76 = scmp.eq.s32.totalorder %s15, 0
    %p77 = por %p75, %p76
    %p78 = scmp.ne.s32.totalorder %s67, %s70
    %p79 = scmp.eq.s32.totalorder %s20, 1
    %p80 = por %p78, %p79
    %p81 = scmp.ne.s32.totalorder %s70, %s71
    %p82 = scmp.eq.s32.totalorder %s20, 0
    %p83 = por %p81, %p82
    %p84 = scmp.ne.s32.totalorder %s70, %s71
    %p85 = scmp.eq.s32.totalorder %s21, 1
    %p86 = por %p84, %p85
    %p88 = scmp.ne.s32.totalorder %s71, %s87
    %p89 = scmp.eq.s32.totalorder %s21, 0
    %p90 = por %p88, %p89
    %s91 = ssub.s32 %s15, %s22
    %p92 = scmp.eq.s32.totalorder %s91, 0
    %s94 = sadd.s32 %s93, 1
    %s95 = scalar_select %p92, %s93, %s94
    %p98 = pneg %p92
    %p99 = scmp.eq.s32.totalorder %s15, 1
    %p100 = por %p98, %p99
    %p101 = scmp.ne.s32.totalorder %s93, %s96
    %p102 = scmp.eq.s32.totalorder %s15, 0
    %p103 = por %p101, %p102
    %p104 = scmp.ne.s32.totalorder %s93, %s96
    %p105 = scmp.eq.s32.totalorder %s20, 1
    %p106 = por %p104, %p105
    %p107 = scmp.ne.s32.totalorder %s96, %s97
    %p108 = scmp.eq.s32.totalorder %s20, 0
    %p109 = por %p107, %p108
    %p110 = scmp.ne.s32.totalorder %s96, %s97
    %p111 = scmp.eq.s32.totalorder %s21, 1
    %p112 = por %p110, %p111
    %p114 = scmp.ne.s32.totalorder %s97, %s113
    %p115 = scmp.eq.s32.totalorder %s21, 0
    %p116 = por %p114, %p115
    %s117 = ssub.s32 %s15, %s22
    %p118 = scmp.eq.s32.totalorder %s117, 0
    %s120 = sadd.s32 %s119, 1
    %s121 = scalar_select %p118, %s119, %s120
    %p124 = pneg %p118
    %p125 = scmp.eq.s32.totalorder %s15, 1
    %p126 = por %p124, %p125
    %p127 = scmp.ne.s32.totalorder %s119, %s122
    %p128 = scmp.eq.s32.totalorder %s15, 0
    %p129 = por %p127, %p128
    %p130 = scmp.ne.s32.totalorder %s119, %s122
    %p131 = scmp.eq.s32.totalorder %s20, 1
    %p132 = por %p130, %p131
    %p133 = scmp.ne.s32.totalorder %s122, %s123
    %p134 = scmp.eq.s32.totalorder %s20, 0
    %p135 = por %p133, %p134
    %p136 = scmp.ne.s32.totalorder %s122, %s123
    %p137 = scmp.eq.s32.totalorder %s21, 1
    %p138 = por %p136, %p137
    %p140 = scmp.ne.s32.totalorder %s123, %s139
    %p141 = scmp.eq.s32.totalorder %s21, 0
    %p142 = por %p140, %p141
    %s143 = ssub.s32 %s15, %s22
    %p144 = scmp.eq.s32.totalorder %s143, 0
    %s146 = sadd.s32 %s145, 1
    %s147 = scalar_select %p144, %s145, %s146
    %p150 = pneg %p144
    %p151 = scmp.eq.s32.totalorder %s15, 1
    %p152 = por %p150, %p151
    %p153 = scmp.ne.s32.totalorder %s145, %s148
    %p154 = scmp.eq.s32.totalorder %s15, 0
    %p155 = por %p153, %p154
    %p156 = scmp.ne.s32.totalorder %s145, %s148
    %p157 = scmp.eq.s32.totalorder %s20, 1
    %p158 = por %p156, %p157
    %p159 = scmp.ne.s32.totalorder %s148, %s149
    %p160 = scmp.eq.s32.totalorder %s20, 0
    %p161 = por %p159, %p160
    %p162 = scmp.ne.s32.totalorder %s148, %s149
    %p163 = scmp.eq.s32.totalorder %s21, 1
    %p164 = por %p162, %p163
    %p166 = scmp.ne.s32.totalorder %s149, %s165
    %p167 = scmp.eq.s32.totalorder %s21, 0
    %p168 = por %p166, %p167
    %s169 = ssub.s32 %s15, %s22
    %p170 = scmp.eq.s32.totalorder %s169, 0
    %s172 = sadd.s32 %s171, 1
    %s173 = scalar_select %p170, %s171, %s172
    %p176 = pneg %p170
    %p177 = scmp.eq.s32.totalorder %s15, 1
    %p178 = por %p176, %p177
    %p179 = scmp.ne.s32.totalorder %s171, %s174
    %p180 = scmp.eq.s32.totalorder %s15, 0
    %p181 = por %p179, %p180
    %p182 = scmp.ne.s32.totalorder %s171, %s174
    %p183 = scmp.eq.s32.totalorder %s20, 1
    %p184 = por %p182, %p183
    %p185 = scmp.ne.s32.totalorder %s174, %s175
    %p186 = scmp.eq.s32.totalorder %s20, 0
    %p187 = por %p185, %p186
    %p188 = scmp.ne.s32.totalorder %s174, %s175
    %p189 = scmp.eq.s32.totalorder %s21, 1
    %p190 = por %p188, %p189
    %p192 = scmp.ne.s32.totalorder %s175, %s191
    %p193 = scmp.eq.s32.totalorder %s21, 0
    %p194 = por %p192, %p193
    %s196 = sadd.s32 %s195, 1
    %p199 = scmp.eq.s32.totalorder %s15, 1
    %p200 = scmp.ne.s32.totalorder %s195, %s197
    %p201 = scmp.eq.s32.totalorder %s15, 0
    %p202 = por %p200, %p201
    %p203 = scmp.ne.s32.totalorder %s195, %s197
    %p204 = scmp.eq.s32.totalorder %s20, 1
    %p205 = por %p203, %p204
    %p206 = scmp.ne.s32.totalorder %s197, %s198
    %p207 = scmp.eq.s32.totalorder %s20, 0
    %p208 = por %p206, %p207
    %p209 = scmp.ne.s32.totalorder %s197, %s198
    %p210 = scmp.eq.s32.totalorder %s21, 1
    %p211 = por %p209, %p210
    %p213 = scmp.ne.s32.totalorder %s198, %s212
    %p214 = scmp.eq.s32.totalorder %s21, 0
    %p215 = por %p213, %p214
    %s217 = sadd.s32 %s216, 1
    %p220 = scmp.eq.s32.totalorder %s15, 1
    %p221 = scmp.ne.s32.totalorder %s216, %s218
    %p222 = scmp.eq.s32.totalorder %s15, 0
    %p223 = por %p221, %p222
    %p224 = scmp.ne.s32.totalorder %s216, %s218
    %p225 = scmp.eq.s32.totalorder %s20, 1
    %p226 = por %p224, %p225
    %p227 = scmp.ne.s32.totalorder %s218, %s219
    %p228 = scmp.eq.s32.totalorder %s20, 0
    %p229 = por %p227, %p228
    %p230 = scmp.ne.s32.totalorder %s218, %s219
    %p231 = scmp.eq.s32.totalorder %s21, 1
    %p232 = por %p230, %p231
    %p234 = scmp.ne.s32.totalorder %s219, %s233
    %p235 = scmp.eq.s32.totalorder %s21, 0
    %p236 = por %p234, %p235
    %s238 = sadd.s32 %s237, 1
    %p241 = scmp.eq.s32.totalorder %s15, 1
    %p242 = scmp.ne.s32.totalorder %s237, %s239
    %p243 = scmp.eq.s32.totalorder %s15, 0
    %p244 = por %p242, %p243
    %p245 = scmp.ne.s32.totalorder %s237, %s239
    %p246 = scmp.eq.s32.totalorder %s20, 1
    %p247 = por %p245, %p246
    %p248 = scmp.ne.s32.totalorder %s239, %s240
    %p249 = scmp.eq.s32.totalorder %s20, 0
    %p250 = por %p248, %p249
    %p251 = scmp.ne.s32.totalorder %s239, %s240
    %p252 = scmp.eq.s32.totalorder %s21, 1
    %p253 = por %p251, %p252
    %p255 = scmp.ne.s32.totalorder %s240, %s254
    %p256 = scmp.eq.s32.totalorder %s21, 0
    %p257 = por %p255, %p256
    %p258 = scmp.le.s32.totalorder 1, %s15
    %p259 = scmp.lt.s32.totalorder %s15, 3
    %p260 = pnand %p258, %p259
    %p261 = pneg %p260
    // Predicated region
    $region9: #{transformer_forward.1} parent=5 // pred_check
      _
    $region10: #{transformer_forward.1} parent=5 // pred_check_branch
      %263 = sbr.rel (%p260) target = $region12
    $region11: #{transformer_forward.1} parent=5 // pred_region
      %s264 = ssub.s32 %s15, 1
      // Predicated region
      $region13: #{transformer_forward.1} parent=11 // pred_check
        %p265 = pneg %p36
      $region14: #{transformer_forward.1} parent=11 // pred_check_branch
        %267 = sbr.rel (%p265) target = $region16
      $region15: #{transformer_forward.1} parent=11 // pred_region
        _
      $region16: #{transformer_forward.1} parent=11 // pred_fallthru
        _
      // Predicated region
      $region17: #{transformer_forward.1} parent=11 // pred_check
        %p268 = pneg %p57
      $region18: #{transformer_forward.1} parent=11 // pred_check_branch
        %270 = sbr.rel (%p268) target = $region20
      $region19: #{transformer_forward.1} parent=11 // pred_region
        _
      $region20: #{transformer_forward.1} parent=11 // pred_fallthru
        _
      // Predicated region
      $region21: #{transformer_forward.1} parent=11 // pred_check
        %p271 = pneg %p208
      $region22: #{transformer_forward.1} parent=11 // pred_check_branch
        %273 = sbr.rel (%p271) target = $region24
      $region23: #{transformer_forward.1} parent=11 // pred_region
        _
      $region24: #{transformer_forward.1} parent=11 // pred_fallthru
        _
      // Predicated region
      $region25: #{transformer_forward.1} parent=11 // pred_check
        %p274 = pneg %p229
      $region26: #{transformer_forward.1} parent=11 // pred_check_branch
        %276 = sbr.rel (%p274) target = $region28
      $region27: #{transformer_forward.1} parent=11 // pred_region
        _
      $region28: #{transformer_forward.1} parent=11 // pred_fallthru
        _
    $region12: #{transformer_forward.1} parent=5 // pred_fallthru
      _
    %p277 = scmp.lt.s32.totalorder %s15, 2
    // Predicated region
    $region29: #{transformer_forward.1} parent=5 // pred_check
      %p278 = pneg %p277
    $region30: #{transformer_forward.1} parent=5 // pred_check_branch
      %280 = sbr.rel (%p278) target = $region32
    $region31: #{transformer_forward.1} parent=5 // pred_region
      // Predicated region
      $region33: #{transformer_forward.1} parent=31 // pred_check
        %p281 = pneg %p77
      $region34: #{transformer_forward.1} parent=31 // pred_check_branch
        %283 = sbr.rel (%p281) target = $region36
      $region35: #{transformer_forward.1} parent=31 // pred_region
        %p284 = scmp.lt.s32.totalorder %s15, 1
        %s285 = scalar_select %p284, %s15, 1
        %s286 = smul.addr %s285, 4
        %s287 = smul.addr %s286, 4
        %s288 = scalar_lea.vmem %s2, %s287
      $region36: #{transformer_forward.1} parent=31 // pred_fallthru
        _
      // Predicated region
      $region37: #{transformer_forward.1} parent=31 // pred_check
        %p289 = pneg %p103
      $region38: #{transformer_forward.1} parent=31 // pred_check_branch
        %291 = sbr.rel (%p289) target = $region40
      $region39: #{transformer_forward.1} parent=31 // pred_region
        %p292 = scmp.lt.s32.totalorder %s15, 1
        %s293 = scalar_select %p292, %s15, 1
        %s294 = smul.addr %s293, 4
        %s295 = smul.addr %s294, 4
        %s296 = scalar_lea.vmem %s3, %s295
      $region40: #{transformer_forward.1} parent=31 // pred_fallthru
        _
      // Predicated region
      $region41: #{transformer_forward.1} parent=31 // pred_check
        %p297 = pneg %p129
      $region42: #{transformer_forward.1} parent=31 // pred_check_branch
        %299 = sbr.rel (%p297) target = $region44
      $region43: #{transformer_forward.1} parent=31 // pred_region
        %p300 = scmp.lt.s32.totalorder %s15, 1
        %s301 = scalar_select %p300, %s15, 1
        %s302 = smul.addr %s301, 4
        %s303 = smul.addr %s302, 4
        %s304 = scalar_lea.vmem %s4, %s303
      $region44: #{transformer_forward.1} parent=31 // pred_fallthru
        _
      // Predicated region
      $region45: #{transformer_forward.1} parent=31 // pred_check
        %p305 = pneg %p155
      $region46: #{transformer_forward.1} parent=31 // pred_check_branch
        %307 = sbr.rel (%p305) target = $region48
      $region47: #{transformer_forward.1} parent=31 // pred_region
        %p308 = scmp.lt.s32.totalorder %s15, 1
        %s309 = scalar_select %p308, %s15, 1
        %s310 = smul.addr %s309, 8
        %s311 = smul.addr %s310, 4
        %s312 = scalar_lea.vmem %s5, %s311
      $region48: #{transformer_forward.1} parent=31 // pred_fallthru
        _
      // Predicated region
      $region49: #{transformer_forward.1} parent=31 // pred_check
        %p313 = pneg %p181
      $region50: #{transformer_forward.1} parent=31 // pred_check_branch
        %315 = sbr.rel (%p313) target = $region52
      $region51: #{transformer_forward.1} parent=31 // pred_region
        %p316 = scmp.lt.s32.totalorder %s15, 1
        %s317 = scalar_select %p316, %s15, 1
        %s318 = smul.addr %s317, 8
        %s319 = scalar_lea.vmem %s6, %s318
      $region52: #{transformer_forward.1} parent=31 // pred_fallthru
        _
    $region32: #{transformer_forward.1} parent=5 // pred_fallthru
      _
    %p320 = scmp.le.s32.totalorder 1, %s15
    %p321 = scmp.lt.s32.totalorder %s15, 3
    %p322 = pnand %p320, %p321
    %p323 = pneg %p322
    // Predicated region
    $region53: #{transformer_forward.1} parent=5 // pred_check
      _
    $region54: #{transformer_forward.1} parent=5 // pred_check_branch
      %325 = sbr.rel (%p322) target = $region56
    $region55: #{transformer_forward.1} parent=5 // pred_region
      %s326 = ssub.s32 %s15, 1
      %p327 = pneg %p36
      %p328 = pneg %p33
      %p329 = pneg %p57
      %p330 = pneg %p54
      %p331 = scmp.lt.s32.totalorder %s20, 1
      %s332 = scalar_select %p331, %s20, 1
      %s333 = smul.addr %s332, 4
      %s334 = smul.addr %s333, 4
      %s335 = scalar_lea.vmem %s2, %s334
      %p336 = pneg %p83
      %p337 = pneg %p80
      %p338 = scmp.lt.s32.totalorder %s20, 1
      %s339 = scalar_select %p338, %s20, 1
      %s340 = smul.addr %s339, 4
      %s341 = smul.addr %s340, 4
      %s342 = scalar_lea.vmem %s3, %s341
      %p343 = pneg %p109
      %p344 = pneg %p106
      %p345 = scmp.lt.s32.totalorder %s20, 1
      %s346 = scalar_select %p345, %s20, 1
      %s347 = smul.addr %s346, 4
      %s348 = smul.addr %s347, 4
      %s349 = scalar_lea.vmem %s4, %s348
      %p350 = pneg %p135
      %p351 = pneg %p132
      %p352 = scmp.lt.s32.totalorder %s20, 1
      %s353 = scalar_select %p352, %s20, 1
      %s354 = smul.addr %s353, 8
      %s355 = smul.addr %s354, 4
      %s356 = scalar_lea.vmem %s5, %s355
      %p357 = pneg %p161
      %p358 = pneg %p158
      %p359 = scmp.lt.s32.totalorder %s20, 1
      %s360 = scalar_select %p359, %s20, 1
      %s361 = smul.addr %s360, 8
      %s362 = scalar_lea.vmem %s6, %s361
      %p363 = pneg %p187
      %p364 = pneg %p184
      %p365 = pneg %p208
      %p366 = pneg %p205
      %p367 = pneg %p229
      %p368 = pneg %p226
      %p369 = pneg %p250
      %p370 = pneg %p247
      %p371 = scmp.lt.s32.totalorder %s20, 1
      %s372 = scalar_select %p371, %s20, 1
      %s373 = smul.addr %s372, 4
      %s374 = smul.addr %s373, 4
      %s375 = scalar_lea.vmem %s2, %s374
      %p376 = scmp.lt.s32.totalorder %s20, 1
      %s377 = scalar_select %p376, %s20, 1
      %s378 = smul.addr %s377, 4
      %s379 = smul.addr %s378, 4
      %s380 = scalar_lea.vmem %s3, %s379
      %p381 = scmp.lt.s32.totalorder %s20, 1
      %s382 = scalar_select %p381, %s20, 1
      %s383 = smul.addr %s382, 4
      %s384 = smul.addr %s383, 4
      %s385 = scalar_lea.vmem %s4, %s384
      %p386 = scmp.lt.s32.totalorder %s20, 1
      %s387 = scalar_select %p386, %s20, 1
      %s388 = smul.addr %s387, 8
      %s389 = smul.addr %s388, 4
      %s390 = scalar_lea.vmem %s5, %s389
      %p391 = scmp.lt.s32.totalorder %s20, 1
      %s392 = scalar_select %p391, %s20, 1
      %s393 = smul.addr %s392, 8
      %s394 = scalar_lea.vmem %s6, %s393
      %p396 = scmp.eq.s32.totalorder %s20, 0
      // Predicated region
      $region57: #{transformer_forward.1} parent=55 // pred_check
        %p397 = pneg %p396
      $region58: #{transformer_forward.1} parent=55 // pred_check_branch
        %399 = sbr.rel (%p397) target = $region60
      $region59: #{transformer_forward.1} parent=55 // pred_region
        %v400 = vld [vmem:[%s0] sm:$0xff]
        %v401 = vld [vmem:[%s0 + $0x8] sm:$0xff]
        %vm402 = vcmask 261120
        %403 = vst.msk [vmem:[#allocation2] sm:$0xff] %vm402, %v400
        %404 = vst.msk [vmem:[#allocation2 + $0x8] sm:$0xff] %vm402, %v401
      $region60: #{transformer_forward.1} parent=55 // pred_fallthru
        _
      %v405 = vld [vmem:[#allocation2] sm:$0xff]
      %v406 = vld [vmem:[#allocation2 + $0x8] sm:$0xff]
      %v407 = vld [vmem:[%s394] sm:$0xff]
      %v408 = vpack.c.bf16 %v406, %v405
      %v409 = vld [vmem:[%s375] sm:$0xf]
      %v410 = vld [vmem:[%s375 + $0x4] sm:$0xf]
      %v411 = vld [vmem:[%s375 + $0x8] sm:$0xf]
      %v412 = vld [vmem:[%s375 + $0xc] sm:$0xf]
      %v413 = vlaneseq
      %v414 = vshrl.u32 %v413, 7
      %v415 = vsub.s32 0, %v414
      %v416 = vrot.slane %v407, %v415
      %v421 = vunpack.c.l.b16 %v409
      %v422 = vunpack.c.l.b16 %v410
      %v423 = vunpack.c.l.b16 %v411
      %v424 = vunpack.c.l.b16 %v412
      %v425 = vpack.c.b16 %v422, %v421
      %v426 = vpack.c.b16 %v424, %v423
      %vm429 = vcmask 261120
      %v431 = vsel %vm429, %v408, 0
      %433 = vmatprep.subr.bf16.mxu0 0
      %434 = vmatpush1.bf16.msra.mxu0 %v425
      %435 = vmatprep.subr.bf16.mxu0 0
      %436 = vmatpush1.bf16.msra.mxu0 %v426
      %437 = vmatprep.subr.bf16.mxu0 0
      %438 = vmatpush1.bf16.msra.mxu0 0
      %439 = vmatprep.subr.bf16.mxu0 0
      %440 = vmatpush1.bf16.msra.mxu0 0
      %441 = vmatprep.subr.bf16.mxu0 0
      %442 = vmatpush1.bf16.msra.mxu0 0
      %443 = vmatprep.subr.bf16.mxu0 0
      %444 = vmatpush1.bf16.msra.mxu0 0
      %445 = vmatprep.subr.bf16.mxu0 0
      %446 = vmatpush1.bf16.msra.mxu0 0
      %447 = vmatprep.subr.bf16.mxu0 0
      %448 = vmatpush1.bf16.msra.mxu0 0
      %449 = vmatprep.subr.bf16.mxu0 0
      %450 = vmatpush1.bf16.msra.mxu0 0
      %451 = vmatprep.subr.bf16.mxu0 0
      %452 = vmatpush1.bf16.msra.mxu0 0
      %453 = vmatprep.subr.bf16.mxu0 0
      %454 = vmatpush1.bf16.msra.mxu0 0
      %455 = vmatprep.subr.bf16.mxu0 0
      %456 = vmatpush1.bf16.msra.mxu0 0
      %457 = vmatprep.subr.bf16.mxu0 0
      %458 = vmatpush1.bf16.msra.mxu0 0
      %459 = vmatprep.subr.bf16.mxu0 0
      %460 = vmatpush1.bf16.msra.mxu0 0
      %461 = vmatprep.subr.bf16.mxu0 0
      %462 = vmatpush1.bf16.msra.mxu0 0
      %463 = vmatprep.subr.bf16.mxu0 0
      %464 = vmatpush1.bf16.msra.mxu0 0
      %465 = vmatprep.mubr.bf16.mxu0 0
      %466 = vmatmul.mubr.bf16.gmra.mrb[0].mxu0 %v431
      %v467 = vpop.f32.mrb[0].mxu0
      %v468 = vadd.f32 %v416, %v467
      %v469 = vpop.f32.mrb[0].mxu0
      %v470 = vpop.f32.mrb[0].mxu0
      %v471 = vadd.f32 %v416, %v470
      %v472 = vpop.f32.mrb[0].mxu0
      %473 = vdwg.mxu0
      %476 = vrot.lane.b32.xlu0 %v468, 120
      %v477 = vpop.permute.xlu0 %476
      %478 = vrot.lane.b32.xlu0 %v471, 120
      %v479 = vpop.permute.xlu0 %478
      %482 = vrot.lane.b32.xlu0 %v468, 112
      %v483 = vpop.permute.xlu0 %482
      %484 = vrot.lane.b32.xlu0 %v471, 112
      %v485 = vpop.permute.xlu0 %484
      %488 = vrot.lane.b32.xlu0 %v468, 104
      %v489 = vpop.permute.xlu0 %488
      %490 = vrot.lane.b32.xlu0 %v471, 104
      %v491 = vpop.permute.xlu0 %490
      %494 = vrot.lane.b32.xlu0 %v468, 96
      %v495 = vpop.permute.xlu0 %494
      %496 = vrot.lane.b32.xlu0 %v471, 96
      %v497 = vpop.permute.xlu0 %496
      %500 = vrot.lane.b32.xlu0 %v468, 88
      %v501 = vpop.permute.xlu0 %500
      %502 = vrot.lane.b32.xlu0 %v471, 88
      %v503 = vpop.permute.xlu0 %502
      %506 = vrot.lane.b32.xlu0 %v468, 80
      %v507 = vpop.permute.xlu0 %506
      %508 = vrot.lane.b32.xlu0 %v471, 80
      %v509 = vpop.permute.xlu0 %508
      %512 = vrot.lane.b32.xlu0 %v468, 72
      %v513 = vpop.permute.xlu0 %512
      %514 = vrot.lane.b32.xlu0 %v471, 72
      %v515 = vpop.permute.xlu0 %514
      %518 = vrot.lane.b32.xlu0 %v468, 64
      %v519 = vpop.permute.xlu0 %518
      %520 = vrot.lane.b32.xlu0 %v471, 64
      %v521 = vpop.permute.xlu0 %520
      %524 = vrot.lane.b32.xlu0 %v468, 56
      %v525 = vpop.permute.xlu0 %524
      %526 = vrot.lane.b32.xlu0 %v471, 56
      %v527 = vpop.permute.xlu0 %526
      %530 = vrot.lane.b32.xlu0 %v468, 48
      %v531 = vpop.permute.xlu0 %530
      %532 = vrot.lane.b32.xlu0 %v471, 48
      %v533 = vpop.permute.xlu0 %532
      %536 = vrot.lane.b32.xlu0 %v468, 40
      %v537 = vpop.permute.xlu0 %536
      %538 = vrot.lane.b32.xlu0 %v471, 40
      %v539 = vpop.permute.xlu0 %538
      %v542 = vpack.c.bf16 %v471, %v468
      %v543 = vpack.c.bf16 %v479, %v477
      %v544 = vpack.c.bf16 %v485, %v483
      %v545 = vpack.c.bf16 %v491, %v489
      %v546 = vpack.c.bf16 %v497, %v495
      %v547 = vpack.c.bf16 %v503, %v501
      %v548 = vpack.c.bf16 %v509, %v507
      %v549 = vpack.c.bf16 %v515, %v513
      %v550 = vpack.c.bf16 %v521, %v519
      %v551 = vpack.c.bf16 %v527, %v525
      %v552 = vpack.c.bf16 %v533, %v531
      %v553 = vpack.c.bf16 %v539, %v537
      %vm554 = vcmask 64512
      %v556 = vsel %vm554, %v542, 0
      %v559 = vsel %vm554, %v546, 0
      %561 = vmatprep.subr.bf16.mxu0 0
      %562 = vmatpush1.bf16.xpose.msra.mxu0 %v559
      %563 = vmatprep.subr.bf16.mxu0 0
      %564 = vmatpush1.bf16.xpose.msra.mxu0 0
      %565 = vmatprep.subr.bf16.mxu0 0
      %566 = vmatpush1.bf16.xpose.msra.mxu0 0
      %567 = vmatprep.subr.bf16.mxu0 0
      %568 = vmatpush1.bf16.xpose.msra.mxu0 0
      %569 = vmatprep.subr.bf16.mxu0 0
      %570 = vmatpush1.bf16.xpose.msra.mxu0 0
      %571 = vmatprep.subr.bf16.mxu0 0
      %572 = vmatpush1.bf16.xpose.msra.mxu0 0
      %573 = vmatprep.subr.bf16.mxu0 0
      %574 = vmatpush1.bf16.xpose.msra.mxu0 0
      %575 = vmatprep.subr.bf16.mxu0 0
      %576 = vmatpush1.bf16.xpose.msra.mxu0 0
      %577 = vmatprep.subr.bf16.mxu0 0
      %578 = vmatpush1.bf16.xpose.msra.mxu0 0
      %579 = vmatprep.subr.bf16.mxu0 0
      %580 = vmatpush1.bf16.xpose.msra.mxu0 0
      %581 = vmatprep.subr.bf16.mxu0 0
      %582 = vmatpush1.bf16.xpose.msra.mxu0 0
      %583 = vmatprep.subr.bf16.mxu0 0
      %584 = vmatpush1.bf16.xpose.msra.mxu0 0
      %585 = vmatprep.subr.bf16.mxu0 0
      %586 = vmatpush1.bf16.xpose.msra.mxu0 0
      %587 = vmatprep.subr.bf16.mxu0 0
      %588 = vmatpush1.bf16.xpose.msra.mxu0 0
      %589 = vmatprep.subr.bf16.mxu0 0
      %590 = vmatpush1.bf16.xpose.msra.mxu0 0
      %591 = vmatprep.subr.bf16.mxu0 0
      %592 = vmatpush1.bf16.xpose.msra.mxu0 0
      %593 = vmatprep.mubr.bf16.mxu0 0
      %594 = vmatmul.mubr.bf16.gmra.mrb[0].mxu0 %v556
      %v595 = vpop.f32.mrb[0].mxu0
      %v596 = vadd.f32 0.0, %v595
      %v597 = vpop.f32.mrb[0].mxu0
      %v598 = vpop.f32.mrb[0].mxu0
      %v599 = vadd.f32 0.0, %v598
      %v600 = vpop.f32.mrb[0].mxu0
      %601 = vdwg.mxu0
      %v603 = vsel %vm554, %v543, 0
      %v606 = vsel %vm554, %v547, 0
      %608 = vmatprep.subr.bf16.mxu0 0
      %609 = vmatpush1.bf16.xpose.msra.mxu0 %v606
      %610 = vmatprep.subr.bf16.mxu0 0
      %611 = vmatpush1.bf16.xpose.msra.mxu0 0
      %612 = vmatprep.subr.bf16.mxu0 0
      %613 = vmatpush1.bf16.xpose.msra.mxu0 0
      %614 = vmatprep.subr.bf16.mxu0 0
      %615 = vmatpush1.bf16.xpose.msra.mxu0 0
      %616 = vmatprep.subr.bf16.mxu0 0
      %617 = vmatpush1.bf16.xpose.msra.mxu0 0
      %618 = vmatprep.subr.bf16.mxu0 0
      %619 = vmatpush1.bf16.xpose.msra.mxu0 0
      %620 = vmatprep.subr.bf16.mxu0 0
      %621 = vmatpush1.bf16.xpose.msra.mxu0 0
      %622 = vmatprep.subr.bf16.mxu0 0
      %623 = vmatpush1.bf16.xpose.msra.mxu0 0
      %624 = vmatprep.subr.bf16.mxu0 0
      %625 = vmatpush1.bf16.xpose.msra.mxu0 0
      %626 = vmatprep.subr.bf16.mxu0 0
      %627 = vmatpush1.bf16.xpose.msra.mxu0 0
      %628 = vmatprep.subr.bf16.mxu0 0
      %629 = vmatpush1.bf16.xpose.msra.mxu0 0
      %630 = vmatprep.subr.bf16.mxu0 0
      %631 = vmatpush1.bf16.xpose.msra.mxu0 0
      %632 = vmatprep.subr.bf16.mxu0 0
      %633 = vmatpush1.bf16.xpose.msra.mxu0 0
      %634 = vmatprep.subr.bf16.mxu0 0
      %635 = vmatpush1.bf16.xpose.msra.mxu0 0
      %636 = vmatprep.subr.bf16.mxu0 0
      %637 = vmatpush1.bf16.xpose.msra.mxu0 0
      %638 = vmatprep.subr.bf16.mxu0 0
      %639 = vmatpush1.bf16.xpose.msra.mxu0 0
      %640 = vmatprep.mubr.bf16.mxu0 0
      %641 = vmatmul.mubr.bf16.gmra.mrb[0].mxu0 %v603
      %v642 = vpop.f32.mrb[0].mxu0
      %v643 = vadd.f32 0.0, %v642
      %v644 = vpop.f32.mrb[0].mxu0
      %v645 = vpop.f32.mrb[0].mxu0
      %v646 = vadd.f32 0.0, %v645
      %v647 = vpop.f32.mrb[0].mxu0
      %648 = vdwg.mxu0
      %v650 = vsel %vm554, %v544, 0
      %v653 = vsel %vm554, %v548, 0
      %655 = vmatprep.subr.bf16.mxu0 0
      %656 = vmatpush1.bf16.xpose.msra.mxu0 %v653
      %657 = vmatprep.subr.bf16.mxu0 0
      %658 = vmatpush1.bf16.xpose.msra.mxu0 0
      %659 = vmatprep.subr.bf16.mxu0 0
      %660 = vmatpush1.bf16.xpose.msra.mxu0 0
      %661 = vmatprep.subr.bf16.mxu0 0
      %662 = vmatpush1.bf16.xpose.msra.mxu0 0
      %663 = vmatprep.subr.bf16.mxu0 0
      %664 = vmatpush1.bf16.xpose.msra.mxu0 0
      %665 = vmatprep.subr.bf16.mxu0 0
      %666 = vmatpush1.bf16.xpose.msra.mxu0 0
      %667 = vmatprep.subr.bf16.mxu0 0
      %668 = vmatpush1.bf16.xpose.msra.mxu0 0
      %669 = vmatprep.subr.bf16.mxu0 0
      %670 = vmatpush1.bf16.xpose.msra.mxu0 0
      %671 = vmatprep.subr.bf16.mxu0 0
      %672 = vmatpush1.bf16.xpose.msra.mxu0 0
      %673 = vmatprep.subr.bf16.mxu0 0
      %674 = vmatpush1.bf16.xpose.msra.mxu0 0
      %675 = vmatprep.subr.bf16.mxu0 0
      %676 = vmatpush1.bf16.xpose.msra.mxu0 0
      %677 = vmatprep.subr.bf16.mxu0 0
      %678 = vmatpush1.bf16.xpose.msra.mxu0 0
      %679 = vmatprep.subr.bf16.mxu0 0
      %680 = vmatpush1.bf16.xpose.msra.mxu0 0
      %681 = vmatprep.subr.bf16.mxu0 0
      %682 = vmatpush1.bf16.xpose.msra.mxu0 0
      %683 = vmatprep.subr.bf16.mxu0 0
      %684 = vmatpush1.bf16.xpose.msra.mxu0 0
      %685 = vmatprep.subr.bf16.mxu0 0
      %686 = vmatpush1.bf16.xpose.msra.mxu0 0
      %687 = vmatprep.mubr.bf16.mxu0 0
      %688 = vmatmul.mubr.bf16.gmra.mrb[0].mxu0 %v650
      %v689 = vpop.f32.mrb[0].mxu0
      %v690 = vadd.f32 0.0, %v689
      %v691 = vpop.f32.mrb[0].mxu0
      %v692 = vpop.f32.mrb[0].mxu0
      %v693 = vadd.f32 0.0, %v692
      %v694 = vpop.f32.mrb[0].mxu0
      %695 = vdwg.mxu0
      %v697 = vsel %vm554, %v545, 0
      %v700 = vsel %vm554, %v549, 0
      %702 = vmatprep.subr.bf16.mxu0 0
      %703 = vmatpush1.bf16.xpose.msra.mxu0 %v700
      %704 = vmatprep.subr.bf16.mxu0 0
      %705 = vmatpush1.bf16.xpose.msra.mxu0 0
      %706 = vmatprep.subr.bf16.mxu0 0
      %707 = vmatpush1.bf16.xpose.msra.mxu0 0
      %708 = vmatprep.subr.bf16.mxu0 0
      %709 = vmatpush1.bf16.xpose.msra.mxu0 0
      %710 = vmatprep.subr.bf16.mxu0 0
      %711 = vmatpush1.bf16.xpose.msra.mxu0 0
      %712 = vmatprep.subr.bf16.mxu0 0
      %713 = vmatpush1.bf16.xpose.msra.mxu0 0
      %714 = vmatprep.subr.bf16.mxu0 0
      %715 = vmatpush1.bf16.xpose.msra.mxu0 0
      %716 = vmatprep.subr.bf16.mxu0 0
      %717 = vmatpush1.bf16.xpose.msra.mxu0 0
      %718 = vmatprep.subr.bf16.mxu0 0
      %719 = vmatpush1.bf16.xpose.msra.mxu0 0
      %720 = vmatprep.subr.bf16.mxu0 0
      %721 = vmatpush1.bf16.xpose.msra.mxu0 0
      %722 = vmatprep.subr.bf16.mxu0 0
      %723 = vmatpush1.bf16.xpose.msra.mxu0 0
      %724 = vmatprep.subr.bf16.mxu0 0
      %725 = vmatpush1.bf16.xpose.msra.mxu0 0
      %726 = vmatprep.subr.bf16.mxu0 0
      %727 = vmatpush1.bf16.xpose.msra.mxu0 0
      %728 = vmatprep.subr.bf16.mxu0 0
      %729 = vmatpush1.bf16.xpose.msra.mxu0 0
      %730 = vmatprep.subr.bf16.mxu0 0
      %731 = vmatpush1.bf16.xpose.msra.mxu0 0
      %732 = vmatprep.subr.bf16.mxu0 0
      %733 = vmatpush1.bf16.xpose.msra.mxu0 0
      %734 = vmatprep.mubr.bf16.mxu0 0
      %735 = vmatmul.mubr.bf16.gmra.mrb[0].mxu0 %v697
      %v736 = vpop.f32.mrb[0].mxu0
      %v737 = vadd.f32 0.0, %v736
      %v738 = vpop.f32.mrb[0].mxu0
      %v739 = vpop.f32.mrb[0].mxu0
      %v740 = vadd.f32 0.0, %v739
      %v741 = vpop.f32.mrb[0].mxu0
      %742 = vdwg.mxu0
      %v743 = vmul.f32 %v596, 0.35355338
      %v744 = vmul.f32 %v599, 0.35355338
      %v745 = vmul.f32 %v643, 0.35355338
      %v746 = vmul.f32 %v646, 0.35355338
      %v747 = vmul.f32 %v690, 0.35355338
      %v748 = vmul.f32 %v693, 0.35355338
      %v749 = vmul.f32 %v737, 0.35355338
      %v750 = vmul.f32 %v740, 0.35355338
      %v751 = vld [vmem:[%s1] sm:$0xff]
      %v752 = vld [vmem:[%s1 + $0x8] sm:$0xff]
      %v753 = vadd.f32 %v743, %v751
      %v754 = vadd.f32 %v744, %v752
      %v755 = vadd.f32 %v745, %v751
      %v756 = vadd.f32 %v746, %v752
      %v757 = vadd.f32 %v747, %v751
      %v758 = vadd.f32 %v748, %v752
      %v759 = vadd.f32 %v749, %v751
      %v760 = vadd.f32 %v750, %v752
      %vm761 = vcmask 130048
      %v762 = vsel %vm761, %v753, -inf
      %763 = vmax.xlane.f32.xlu0 %v762
      %v764 = vpop.xlane.xlu0 %763
      %v765 = vsel %vm761, %v754, -inf
      %766 = vmax.xlane.f32.xlu0 %v765
      %v767 = vpop.xlane.xlu0 %766
      %v768 = vsel %vm761, %v755, -inf
      %769 = vmax.xlane.f32.xlu0 %v768
      %v770 = vpop.xlane.xlu0 %769
      %v771 = vsel %vm761, %v756, -inf
      %772 = vmax.xlane.f32.xlu0 %v771
      %v773 = vpop.xlane.xlu0 %772
      %v774 = vsel %vm761, %v757, -inf
      %775 = vmax.xlane.f32.xlu0 %v774
      %v776 = vpop.xlane.xlu0 %775
      %v777 = vsel %vm761, %v758, -inf
      %778 = vmax.xlane.f32.xlu0 %v777
      %v779 = vpop.xlane.xlu0 %778
      %v780 = vsel %vm761, %v759, -inf
      %781 = vmax.xlane.f32.xlu0 %v780
      %v782 = vpop.xlane.xlu0 %781
      %v783 = vsel %vm761, %v760, -inf
      %784 = vmax.xlane.f32.xlu0 %v783
      %v785 = vpop.xlane.xlu0 %784
      %v786 = vsub.f32 %v753, %v764
      %v787 = vsub.f32 %v754, %v767
      %v788 = vsub.f32 %v755, %v770
      %v789 = vsub.f32 %v756, %v773
      %v790 = vsub.f32 %v757, %v776
      %v791 = vsub.f32 %v758, %v779
      %v792 = vsub.f32 %v759, %v782
      %v793 = vsub.f32 %v760, %v785
      %v794 = vmul.f32 %v786, 1.442695
      %v795 = vpow.pop %v794
      %v796 = vmul.f32 %v787, 1.442695
      %v797 = vpow.pop %v796
      %v798 = vmul.f32 %v788, 1.442695
      %v799 = vpow.pop %v798
      %v800 = vmul.f32 %v789, 1.442695
      %v801 = vpow.pop %v800
      %v802 = vmul.f32 %v790, 1.442695
      %v803 = vpow.pop %v802
      %v804 = vmul.f32 %v791, 1.442695
      %v805 = vpow.pop %v804
      %v806 = vmul.f32 %v792, 1.442695
      %v807 = vpow.pop %v806
      %v808 = vmul.f32 %v793, 1.442695
      %v809 = vpow.pop %v808
      %v810 = vsel %vm761, %v795, 0.0
      %811 = vadd.xlane.f32.xlu0 %v810
      %v812 = vpop.xlane.xlu0 %811
      %v813 = vsel %vm761, %v797, 0.0
      %814 = vadd.xlane.f32.xlu0 %v813
      %v815 = vpop.xlane.xlu0 %814
      %v816 = vsel %vm761, %v799, 0.0
      %817 = vadd.xlane.f32.xlu0 %v816
      %v818 = vpop.xlane.xlu0 %817
      %v819 = vsel %vm761, %v801, 0.0
      %820 = vadd.xlane.f32.xlu0 %v819
      %v821 = vpop.xlane.xlu0 %820
      %v822 = vsel %vm761, %v803, 0.0
      %823 = vadd.xlane.f32.xlu0 %v822
      %v824 = vpop.xlane.xlu0 %823
      %v825 = vsel %vm761, %v805, 0.0
      %826 = vadd.xlane.f32.xlu0 %v825
      %v827 = vpop.xlane.xlu0 %826
      %v828 = vsel %vm761, %v807, 0.0
      %829 = vadd.xlane.f32.xlu0 %v828
      %v830 = vpop.xlane.xlu0 %829
      %v831 = vsel %vm761, %v809, 0.0
      %832 = vadd.xlane.f32.xlu0 %v831
      %v833 = vpop.xlane.xlu0 %832
      %v834 = vrcp.pop %v812
      %v835 = vrcp.pop %v815
      %v836 = vrcp.pop %v818
      %v837 = vrcp.pop %v821
      %v838 = vrcp.pop %v824
      %v839 = vrcp.pop %v827
      %v840 = vrcp.pop %v830
      %v841 = vrcp.pop %v833
      %v842 = vmul.f32 %v795, %v834
      %v843 = vmul.f32 %v797, %v835
      %v844 = vmul.f32 %v799, %v836
      %v845 = vmul.f32 %v801, %v837
      %v846 = vmul.f32 %v803, %v838
      %v847 = vmul.f32 %v805, %v839
      %v848 = vmul.f32 %v807, %v840
      %v849 = vmul.f32 %v809, %v841
      %v850 = vpack.c.bf16 %v843, %v842
      %v851 = vpack.c.bf16 %v845, %v844
      %v852 = vpack.c.bf16 %v847, %v846
      %v853 = vpack.c.bf16 %v849, %v848
      %v855 = vsel %vm761, %v850, 0
      %857 = vmatprep.subr.bf16.mxu0 0
      %858 = vmatpush1.bf16.msra.mxu0 %v550
      %859 = vmatprep.subr.bf16.mxu0 0
      %860 = vmatpush1.bf16.msra.mxu0 0
      %861 = vmatprep.subr.bf16.mxu0 0
      %862 = vmatpush1.bf16.msra.mxu0 0
      %863 = vmatprep.subr.bf16.mxu0 0
      %864 = vmatpush1.bf16.msra.mxu0 0
      %865 = vmatprep.subr.bf16.mxu0 0
      %866 = vmatpush1.bf16.msra.mxu0 0
      %867 = vmatprep.subr.bf16.mxu0 0
      %868 = vmatpush1.bf16.msra.mxu0 0
      %869 = vmatprep.subr.bf16.mxu0 0
      %870 = vmatpush1.bf16.msra.mxu0 0
      %871 = vmatprep.subr.bf16.mxu0 0
      %872 = vmatpush1.bf16.msra.mxu0 0
      %873 = vmatprep.subr.bf16.mxu0 0
      %874 = vmatpush1.bf16.msra.mxu0 0
      %875 = vmatprep.subr.bf16.mxu0 0
      %876 = vmatpush1.bf16.msra.mxu0 0
      %877 = vmatprep.subr.bf16.mxu0 0
      %878 = vmatpush1.bf16.msra.mxu0 0
      %879 = vmatprep.subr.bf16.mxu0 0
      %880 = vmatpush1.bf16.msra.mxu0 0
      %881 = vmatprep.subr.bf16.mxu0 0
      %882 = vmatpush1.bf16.msra.mxu0 0
      %883 = vmatprep.subr.bf16.mxu0 0
      %884 = vmatpush1.bf16.msra.mxu0 0
      %885 = vmatprep.subr.bf16.mxu0 0
      %886 = vmatpush1.bf16.msra.mxu0 0
      %887 = vmatprep.subr.bf16.mxu0 0
      %888 = vmatpush1.bf16.msra.mxu0 0
      %889 = vmatprep.mubr.bf16.mxu0 0
      %890 = vmatmul.mubr.bf16.gmra.mrb[0].mxu0 %v855
      %v891 = vpop.f32.mrb[0].mxu0
      %v892 = vadd.f32 0.0, %v891
      %v893 = vpop.f32.mrb[0].mxu0
      %v894 = vpop.f32.mrb[0].mxu0
      %v895 = vadd.f32 0.0, %v894
      %v896 = vpop.f32.mrb[0].mxu0
      %897 = vdwg.mxu0
      %v899 = vsel %vm761, %v851, 0
      %901 = vmatprep.subr.bf16.mxu0 0
      %902 = vmatpush1.bf16.msra.mxu0 %v551
      %903 = vmatprep.subr.bf16.mxu0 0
      %904 = vmatpush1.bf16.msra.mxu0 0
      %905 = vmatprep.subr.bf16.mxu0 0
      %906 = vmatpush1.bf16.msra.mxu0 0
      %907 = vmatprep.subr.bf16.mxu0 0
      %908 = vmatpush1.bf16.msra.mxu0 0
      %909 = vmatprep.subr.bf16.mxu0 0
      %910 = vmatpush1.bf16.msra.mxu0 0
      %911 = vmatprep.subr.bf16.mxu0 0
      %912 = vmatpush1.bf16.msra.mxu0 0
      %913 = vmatprep.subr.bf16.mxu0 0
      %914 = vmatpush1.bf16.msra.mxu0 0
      %915 = vmatprep.subr.bf16.mxu0 0
      %916 = vmatpush1.bf16.msra.mxu0 0
      %917 = vmatprep.subr.bf16.mxu0 0
      %918 = vmatpush1.bf16.msra.mxu0 0
      %919 = vmatprep.subr.bf16.mxu0 0
      %920 = vmatpush1.bf16.msra.mxu0 0
      %921 = vmatprep.subr.bf16.mxu0 0
      %922 = vmatpush1.bf16.msra.mxu0 0
      %923 = vmatprep.subr.bf16.mxu0 0
      %924 = vmatpush1.bf16.msra.mxu0 0
      %925 = vmatprep.subr.bf16.mxu0 0
      %926 = vmatpush1.bf16.msra.mxu0 0
      %927 = vmatprep.subr.bf16.mxu0 0
      %928 = vmatpush1.bf16.msra.mxu0 0
      %929 = vmatprep.subr.bf16.mxu0 0
      %930 = vmatpush1.bf16.msra.mxu0 0
      %931 = vmatprep.subr.bf16.mxu0 0
      %932 = vmatpush1.bf16.msra.mxu0 0
      %933 = vmatprep.mubr.bf16.mxu0 0
      %934 = vmatmul.mubr.bf16.gmra.mrb[0].mxu0 %v899
      %v935 = vpop.f32.mrb[0].mxu0
      %v936 = vadd.f32 0.0, %v935
      %v937 = vpop.f32.mrb[0].mxu0
      %v938 = vpop.f32.mrb[0].mxu0
      %v939 = vadd.f32 0.0, %v938
      %v940 = vpop.f32.mrb[0].mxu0
      %941 = vdwg.mxu0
      %v943 = vsel %vm761, %v852, 0
      %945 = vmatprep.subr.bf16.mxu0 0
      %946 = vmatpush1.bf16.msra.mxu0 %v552
      %947 = vmatprep.subr.bf16.mxu0 0
      %948 = vmatpush1.bf16.msra.mxu0 0
      %949 = vmatprep.subr.bf16.mxu0 0
      %950 = vmatpush1.bf16.msra.mxu0 0
      %951 = vmatprep.subr.bf16.mxu0 0
      %952 = vmatpush1.bf16.msra.mxu0 0
      %953 = vmatprep.subr.bf16.mxu0 0
      %954 = vmatpush1.bf16.msra.mxu0 0
      %955 = vmatprep.subr.bf16.mxu0 0
      %956 = vmatpush1.bf16.msra.mxu0 0
      %957 = vmatprep.subr.bf16.mxu0 0
      %958 = vmatpush1.bf16.msra.mxu0 0
      %959 = vmatprep.subr.bf16.mxu0 0
      %960 = vmatpush1.bf16.msra.mxu0 0
      %961 = vmatprep.subr.bf16.mxu0 0
      %962 = vmatpush1.bf16.msra.mxu0 0
      %963 = vmatprep.subr.bf16.mxu0 0
      %964 = vmatpush1.bf16.msra.mxu0 0
      %965 = vmatprep.subr.bf16.mxu0 0
      %966 = vmatpush1.bf16.msra.mxu0 0
      %967 = vmatprep.subr.bf16.mxu0 0
      %968 = vmatpush1.bf16.msra.mxu0 0
      %969 = vmatprep.subr.bf16.mxu0 0
      %970 = vmatpush1.bf16.msra.mxu0 0
      %971 = vmatprep.subr.bf16.mxu0 0
      %972 = vmatpush1.bf16.msra.mxu0 0
      %973 = vmatprep.subr.bf16.mxu0 0
      %974 = vmatpush1.bf16.msra.mxu0 0
      %975 = vmatprep.subr.bf16.mxu0 0
      %976 = vmatpush1.bf16.msra.mxu0 0
      %977 = vmatprep.mubr.bf16.mxu0 0
      %978 = vmatmul.mubr.bf16.gmra.mrb[0].mxu0 %v943
      %v979 = vpop.f32.mrb[0].mxu0
      %v980 = vadd.f32 0.0, %v979
      %v981 = vpop.f32.mrb[0].mxu0
      %v982 = vpop.f32.mrb[0].mxu0
      %v983 = vadd.f32 0.0, %v982
      %v984 = vpop.f32.mrb[0].mxu0
      %985 = vdwg.mxu0
      %v987 = vsel %vm761, %v853, 0
      %989 = vmatprep.subr.bf16.mxu0 0
      %990 = vmatpush1.bf16.msra.mxu0 %v553
      %991 = vmatprep.subr.bf16.mxu0 0
      %992 = vmatpush1.bf16.msra.mxu0 0
      %993 = vmatprep.subr.bf16.mxu0 0
      %994 = vmatpush1.bf16.msra.mxu0 0
      %995 = vmatprep.subr.bf16.mxu0 0
      %996 = vmatpush1.bf16.msra.mxu0 0
      %997 = vmatprep.subr.bf16.mxu0 0
      %998 = vmatpush1.bf16.msra.mxu0 0
      %999 = vmatprep.subr.bf16.mxu0 0
      %1000 = vmatpush1.bf16.msra.mxu0 0
      %1001 = vmatprep.subr.bf16.mxu0 0
      %1002 = vmatpush1.bf16.msra.mxu0 0
      %1003 = vmatprep.subr.bf16.mxu0 0
      %1004 = vmatpush1.bf16.msra.mxu0 0
      %1005 = vmatprep.subr.bf16.mxu0 0
      %1006 = vmatpush1.bf16.msra.mxu0 0
      %1007 = vmatprep.subr.bf16.mxu0 0
      %1008 = vmatpush1.bf16.msra.mxu0 0
      %1009 = vmatprep.subr.bf16.mxu0 0
      %1010 = vmatpush1.bf16.msra.mxu0 0
      %1011 = vmatprep.subr.bf16.mxu0 0
      %1012 = vmatpush1.bf16.msra.mxu0 0
      %1013 = vmatprep.subr.bf16.mxu0 0
      %1014 = vmatpush1.bf16.msra.mxu0 0
      %1015 = vmatprep.subr.bf16.mxu0 0
      %1016 = vmatpush1.bf16.msra.mxu0 0
      %1017 = vmatprep.subr.bf16.mxu0 0
      %1018 = vmatpush1.bf16.msra.mxu0 0
      %1019 = vmatprep.subr.bf16.mxu0 0
      %1020 = vmatpush1.bf16.msra.mxu0 0
      %1021 = vmatprep.mubr.bf16.mxu0 0
      %1022 = vmatmul.mubr.bf16.gmra.mrb[0].mxu0 %v987
      %v1023 = vpop.f32.mrb[0].mxu0
      %v1024 = vadd.f32 0.0, %v1023
      %v1025 = vpop.f32.mrb[0].mxu0
      %v1026 = vpop.f32.mrb[0].mxu0
      %v1027 = vadd.f32 0.0, %v1026
      %v1028 = vpop.f32.mrb[0].mxu0
      %1029 = vdwg.mxu0
      %v1030 = vpack.c.bf16 %v895, %v892
      %v1031 = vpack.c.bf16 %v939, %v936
      %v1032 = vpack.c.bf16 %v983, %v980
      %v1033 = vpack.c.bf16 %v1027, %v1024
      %v1034 = vld [vmem:[%s380] sm:$0xf]
      %v1035 = vld [vmem:[%s380 + $0x4] sm:$0xf]
      %v1036 = vld [vmem:[%s380 + $0x8] sm:$0xf]
      %v1037 = vld [vmem:[%s380 + $0xc] sm:$0xf]
      %v1039 = vsel %vm554, %v1030, 0
      %vm1041 = vcmask 1043456
      %v1043 = vsel %vm1041, %v1034, 0
      %1045 = vmatprep.subr.bf16.mxu0 0
      %1046 = vmatpush1.bf16.msra.mxu0 %v1043
      %1047 = vmatprep.subr.bf16.mxu0 0
      %1048 = vmatpush1.bf16.msra.mxu0 0
      %1049 = vmatprep.subr.bf16.mxu0 0
      %1050 = vmatpush1.bf16.msra.mxu0 0
      %1051 = vmatprep.subr.bf16.mxu0 0
      %1052 = vmatpush1.bf16.msra.mxu0 0
      %1053 = vmatprep.subr.bf16.mxu0 0
      %1054 = vmatpush1.bf16.msra.mxu0 0
      %1055 = vmatprep.subr.bf16.mxu0 0
      %1056 = vmatpush1.bf16.msra.mxu0 0
      %1057 = vmatprep.subr.bf16.mxu0 0
      %1058 = vmatpush1.bf16.msra.mxu0 0
      %1059 = vmatprep.subr.bf16.mxu0 0
      %1060 = vmatpush1.bf16.msra.mxu0 0
      %1061 = vmatprep.subr.bf16.mxu0 0
      %1062 = vmatpush1.bf16.msra.mxu0 0
      %1063 = vmatprep.subr.bf16.mxu0 0
      %1064 = vmatpush1.bf16.msra.mxu0 0
      %1065 = vmatprep.subr.bf16.mxu0 0
      %1066 = vmatpush1.bf16.msra.mxu0 0
      %1067 = vmatprep.subr.bf16.mxu0 0
      %1068 = vmatpush1.bf16.msra.mxu0 0
      %1069 = vmatprep.subr.bf16.mxu0 0
      %1070 = vmatpush1.bf16.msra.mxu0 0
      %1071 = vmatprep.subr.bf16.mxu0 0
      %1072 = vmatpush1.bf16.msra.mxu0 0
      %1073 = vmatprep.subr.bf16.mxu0 0
      %1074 = vmatpush1.bf16.msra.mxu0 0
      %1075 = vmatprep.subr.bf16.mxu0 0
      %1076 = vmatpush1.bf16.msra.mxu0 0
      %1077 = vmatprep.mubr.bf16.mxu0 0
      %1078 = vmatmul.mubr.bf16.gmra.mrb[0].mxu0 %v1039
      %v1079 = vpop.f32.mrb[0].mxu0
      %v1080 = vadd.f32 0.0, %v1079
      %v1081 = vpop.f32.mrb[0].mxu0
      %v1082 = vpop.f32.mrb[0].mxu0
      %v1083 = vadd.f32 0.0, %v1082
      %v1084 = vpop.f32.mrb[0].mxu0
      %1085 = vdwg.mxu0
      %v1087 = vsel %vm554, %v1031, 0
      %v1090 = vsel %vm1041, %v1035, 0
      %1092 = vmatprep.subr.bf16.mxu0 0
      %1093 = vmatpush1.bf16.msra.mxu0 %v1090
      %1094 = vmatprep.subr.bf16.mxu0 0
      %1095 = vmatpush1.bf16.msra.mxu0 0
      %1096 = vmatprep.subr.bf16.mxu0 0
      %1097 = vmatpush1.bf16.msra.mxu0 0
      %1098 = vmatprep.subr.bf16.mxu0 0
      %1099 = vmatpush1.bf16.msra.mxu0 0
      %1100 = vmatprep.subr.bf16.mxu0 0
      %1101 = vmatpush1.bf16.msra.mxu0 0
      %1102 = vmatprep.subr.bf16.mxu0 0
      %1103 = vmatpush1.bf16.msra.mxu0 0
      %1104 = vmatprep.subr.bf16.mxu0 0
      %1105 = vmatpush1.bf16.msra.mxu0 0
      %1106 = vmatprep.subr.bf16.mxu0 0
      %1107 = vmatpush1.bf16.msra.mxu0 0
      %1108 = vmatprep.subr.bf16.mxu0 0
      %1109 = vmatpush1.bf16.msra.mxu0 0
      %1110 = vmatprep.subr.bf16.mxu0 0
      %1111 = vmatpush1.bf16.msra.mxu0 0
      %1112 = vmatprep.subr.bf16.mxu0 0
      %1113 = vmatpush1.bf16.msra.mxu0 0
      %1114 = vmatprep.subr.bf16.mxu0 0
      %1115 = vmatpush1.bf16.msra.mxu0 0
      %1116 = vmatprep.subr.bf16.mxu0 0
      %1117 = vmatpush1.bf16.msra.mxu0 0
      %1118 = vmatprep.subr.bf16.mxu0 0
      %1119 = vmatpush1.bf16.msra.mxu0 0
      %1120 = vmatprep.subr.bf16.mxu0 0
      %1121 = vmatpush1.bf16.msra.mxu0 0
      %1122 = vmatprep.subr.bf16.mxu0 0
      %1123 = vmatpush1.bf16.msra.mxu0 0
      %1124 = vmatprep.mubr.bf16.mxu0 0
      %1125 = vmatmul.mubr.bf16.gmra.mrb[0].mxu0 %v1087
      %v1126 = vpop.f32.mrb[0].mxu0
      %v1127 = vadd.f32 0.0, %v1126
      %v1128 = vpop.f32.mrb[0].mxu0
      %v1129 = vpop.f32.mrb[0].mxu0
      %v1130 = vadd.f32 0.0, %v1129
      %v1131 = vpop.f32.mrb[0].mxu0
      %1132 = vdwg.mxu0
      %v1134 = vsel %vm554, %v1032, 0
      %v1137 = vsel %vm1041, %v1036, 0
      %1139 = vmatprep.subr.bf16.mxu0 0
      %1140 = vmatpush1.bf16.msra.mxu0 %v1137
      %1141 = vmatprep.subr.bf16.mxu0 0
      %1142 = vmatpush1.bf16.msra.mxu0 0
      %1143 = vmatprep.subr.bf16.mxu0 0
      %1144 = vmatpush1.bf16.msra.mxu0 0
      %1145 = vmatprep.subr.bf16.mxu0 0
      %1146 = vmatpush1.bf16.msra.mxu0 0
      %1147 = vmatprep.subr.bf16.mxu0 0
      %1148 = vmatpush1.bf16.msra.mxu0 0
      %1149 = vmatprep.subr.bf16.mxu0 0
      %1150 = vmatpush1.bf16.msra.mxu0 0
      %1151 = vmatprep.subr.bf16.mxu0 0
      %1152 = vmatpush1.bf16.msra.mxu0 0
      %1153 = vmatprep.subr.bf16.mxu0 0
      %1154 = vmatpush1.bf16.msra.mxu0 0
      %1155 = vmatprep.subr.bf16.mxu0 0
      %1156 = vmatpush1.bf16.msra.mxu0 0
      %1157 = vmatprep.subr.bf16.mxu0 0
      %1158 = vmatpush1.bf16.msra.mxu0 0
      %1159 = vmatprep.subr.bf16.mxu0 0
      %1160 = vmatpush1.bf16.msra.mxu0 0
      %1161 = vmatprep.subr.bf16.mxu0 0
      %1162 = vmatpush1.bf16.msra.mxu0 0
      %1163 = vmatprep.subr.bf16.mxu0 0
      %1164 = vmatpush1.bf16.msra.mxu0 0
      %1165 = vmatprep.subr.bf16.mxu0 0
      %1166 = vmatpush1.bf16.msra.mxu0 0
      %1167 = vmatprep.subr.bf16.mxu0 0
      %1168 = vmatpush1.bf16.msra.mxu0 0
      %1169 = vmatprep.subr.bf16.mxu0 0
      %1170 = vmatpush1.bf16.msra.mxu0 0
      %1171 = vmatprep.mubr.bf16.mxu0 0
      %1172 = vmatmul.mubr.bf16.gmra.mrb[0].mxu0 %v1134
      %v1173 = vpop.f32.mrb[0].mxu0
      %v1174 = vadd.f32 0.0, %v1173
      %v1175 = vpop.f32.mrb[0].mxu0
      %v1176 = vpop.f32.mrb[0].mxu0
      %v1177 = vadd.f32 0.0, %v1176
      %v1178 = vpop.f32.mrb[0].mxu0
      %1179 = vdwg.mxu0
      %v1181 = vsel %vm554, %v1033, 0
      %v1184 = vsel %vm1041, %v1037, 0
      %1186 = vmatprep.subr.bf16.mxu0 0
      %1187 = vmatpush1.bf16.msra.mxu0 %v1184
      %1188 = vmatprep.subr.bf16.mxu0 0
      %1189 = vmatpush1.bf16.msra.mxu0 0
      %1190 = vmatprep.subr.bf16.mxu0 0
      %1191 = vmatpush1.bf16.msra.mxu0 0
      %1192 = vmatprep.subr.bf16.mxu0 0
      %1193 = vmatpush1.bf16.msra.mxu0 0
      %1194 = vmatprep.subr.bf16.mxu0 0
      %1195 = vmatpush1.bf16.msra.mxu0 0
      %1196 = vmatprep.subr.bf16.mxu0 0
      %1197 = vmatpush1.bf16.msra.mxu0 0
      %1198 = vmatprep.subr.bf16.mxu0 0
      %1199 = vmatpush1.bf16.msra.mxu0 0
      %1200 = vmatprep.subr.bf16.mxu0 0
      %1201 = vmatpush1.bf16.msra.mxu0 0
      %1202 = vmatprep.subr.bf16.mxu0 0
      %1203 = vmatpush1.bf16.msra.mxu0 0
      %1204 = vmatprep.subr.bf16.mxu0 0
      %1205 = vmatpush1.bf16.msra.mxu0 0
      %1206 = vmatprep.subr.bf16.mxu0 0
      %1207 = vmatpush1.bf16.msra.mxu0 0
      %1208 = vmatprep.subr.bf16.mxu0 0
      %1209 = vmatpush1.bf16.msra.mxu0 0
      %1210 = vmatprep.subr.bf16.mxu0 0
      %1211 = vmatpush1.bf16.msra.mxu0 0
      %1212 = vmatprep.subr.bf16.mxu0 0
      %1213 = vmatpush1.bf16.msra.mxu0 0
      %1214 = vmatprep.subr.bf16.mxu0 0
      %1215 = vmatpush1.bf16.msra.mxu0 0
      %1216 = vmatprep.subr.bf16.mxu0 0
      %1217 = vmatpush1.bf16.msra.mxu0 0
      %1218 = vmatprep.mubr.bf16.mxu0 0
      %1219 = vmatmul.mubr.bf16.gmra.mrb[0].mxu0 %v1181
      %v1220 = vpop.f32.mrb[0].mxu0
      %v1221 = vadd.f32 0.0, %v1220
      %v1222 = vpop.f32.mrb[0].mxu0
      %v1223 = vpop.f32.mrb[0].mxu0
      %v1224 = vadd.f32 0.0, %v1223
      %v1225 = vpop.f32.mrb[0].mxu0
      %1226 = vdwg.mxu0
      %v1227 = vsel %vm429, %v1080, 0.0
      %v1228 = vsel %vm429, %v1127, 0.0
      %v1229 = vadd.f32 %v1227, %v1228
      %v1230 = vsel %vm429, %v1174, 0.0
      %v1231 = vadd.f32 %v1229, %v1230
      %v1232 = vsel %vm429, %v1221, 0.0
      %v1233 = vadd.f32 %v1231, %v1232
      %v1234 = vsel %vm429, %v1083, 0.0
      %v1235 = vsel %vm429, %v1130, 0.0
      %v1236 = vadd.f32 %v1234, %v1235
      %v1237 = vsel %vm429, %v1177, 0.0
      %v1238 = vadd.f32 %v1236, %v1237
      %v1239 = vsel %vm429, %v1224, 0.0
      %v1240 = vadd.f32 %v1238, %v1239
      %v1241 = vlaneseq
      %v1242 = vshrl.u32 %v1241, 7
      %v1243 = vsub.s32 1, %v1242
      %v1244 = vrot.slane %v407, %v1243
      %v1245 = vadd.f32 %v1233, %v1244
      %v1246 = vadd.f32 %v1240, %v1244
      %v1247 = vadd.f32 %v405, %v1245
      %v1248 = vadd.f32 %v406, %v1246
      %v1249 = vsel %vm429, %v1247, 0.0
      %1250 = vadd.xlane.f32.xlu0 %v1249
      %v1251 = vpop.xlane.xlu0 %1250
      %v1252 = vsel %vm429, %v1248, 0.0
      %1253 = vadd.xlane.f32.xlu0 %v1252
      %v1254 = vpop.xlane.xlu0 %1253
      %v1255 = vrcp.pop 32.0
      %v1256 = vmul.f32 %v1251, %v1255
      %v1257 = vmul.f32 %v1254, %v1255
      %v1258 = vsub.f32 %v1247, %v1256
      %v1259 = vsub.f32 %v1248, %v1257
      %v1260 = vmul.f32 %v1258, %v1258
      %v1261 = vmul.f32 %v1259, %v1259
      %v1262 = vsel %vm429, %v1260, 0.0
      %1263 = vadd.xlane.f32.xlu0 %v1262
      %v1264 = vpop.xlane.xlu0 %1263
      %v1265 = vsel %vm429, %v1261, 0.0
      %1266 = vadd.xlane.f32.xlu0 %v1265
      %v1267 = vpop.xlane.xlu0 %1266
      %v1268 = vmul.f32 %v1264, %v1255
      %v1269 = vmul.f32 %v1267, %v1255
      %v1270 = vadd.f32 %v1268, 1e-05
      %v1271 = vadd.f32 %v1269, 1e-05
      %v1272 = vrsqrt.pop %v1270
      %v1273 = vrsqrt.pop %v1271
      %v1274 = vmul.f32 %v1258, %v1272
      %v1275 = vmul.f32 %v1259, %v1273
      %v1276 = vlaneseq
      %v1277 = vshrl.u32 %v1276, 7
      %v1278 = vsub.s32 4, %v1277
      %v1279 = vrot.slane %v407, %v1278
      %v1280 = vmul.f32 %v1274, %v1279
      %v1281 = vmul.f32 %v1275, %v1279
      %v1282 = vlaneseq
      %v1283 = vshrl.u32 %v1282, 7
      %v1284 = vsub.s32 5, %v1283
      %v1285 = vrot.slane %v407, %v1284
      %v1286 = vadd.f32 %v1280, %v1285
      %v1287 = vadd.f32 %v1281, %v1285
      %v1288 = vpack.c.bf16 %v1287, %v1286
      %v1289 = vld [vmem:[%s385] sm:$0xf]
      %v1290 = vld [vmem:[%s385 + $0x4] sm:$0xf]
      %v1291 = vld [vmem:[%s385 + $0x8] sm:$0xf]
      %v1292 = vld [vmem:[%s385 + $0xc] sm:$0xf]
      %v1293 = vlaneseq
      %v1294 = vshrl.u32 %v1293, 7
      %v1295 = vsub.s32 2, %v1294
      %v1296 = vrot.slane %v407, %v1295
      %v1301 = vunpack.c.l.b16 %v1289
      %v1302 = vunpack.c.l.b16 %v1290
      %v1303 = vunpack.c.l.b16 %v1291
      %v1304 = vunpack.c.l.b16 %v1292
      %v1305 = vpack.c.b16 %v1302, %v1301
      %v1306 = vpack.c.b16 %v1304, %v1303
      %v1310 = vsel %vm429, %v1288, 0
      %1312 = vmatprep.subr.bf16.mxu0 0
      %1313 = vmatpush1.bf16.msra.mxu0 %v1305
      %1314 = vmatprep.subr.bf16.mxu0 0
      %1315 = vmatpush1.bf16.msra.mxu0 %v1306
      %1316 = vmatprep.subr.bf16.mxu0 0
      %1317 = vmatpush1.bf16.msra.mxu0 0
      %1318 = vmatprep.subr.bf16.mxu0 0
      %1319 = vmatpush1.bf16.msra.mxu0 0
      %1320 = vmatprep.subr.bf16.mxu0 0
      %1321 = vmatpush1.bf16.msra.mxu0 0
      %1322 = vmatprep.subr.bf16.mxu0 0
      %1323 = vmatpush1.bf16.msra.mxu0 0
      %1324 = vmatprep.subr.bf16.mxu0 0
      %1325 = vmatpush1.bf16.msra.mxu0 0
      %1326 = vmatprep.subr.bf16.mxu0 0
      %1327 = vmatpush1.bf16.msra.mxu0 0
      %1328 = vmatprep.subr.bf16.mxu0 0
      %1329 = vmatpush1.bf16.msra.mxu0 0
      %1330 = vmatprep.subr.bf16.mxu0 0
      %1331 = vmatpush1.bf16.msra.mxu0 0
      %1332 = vmatprep.subr.bf16.mxu0 0
      %1333 = vmatpush1.bf16.msra.mxu0 0
      %1334 = vmatprep.subr.bf16.mxu0 0
      %1335 = vmatpush1.bf16.msra.mxu0 0
      %1336 = vmatprep.subr.bf16.mxu0 0
      %1337 = vmatpush1.bf16.msra.mxu0 0
      %1338 = vmatprep.subr.bf16.mxu0 0
      %1339 = vmatpush1.bf16.msra.mxu0 0
      %1340 = vmatprep.subr.bf16.mxu0 0
      %1341 = vmatpush1.bf16.msra.mxu0 0
      %1342 = vmatprep.subr.bf16.mxu0 0
      %1343 = vmatpush1.bf16.msra.mxu0 0
      %1344 = vmatprep.mubr.bf16.mxu0 0
      %1345 = vmatmul.mubr.bf16.gmra.mrb[0].mxu0 %v1310
      %v1346 = vpop.f32.mrb[0].mxu0
      %v1347 = vadd.f32 %v1296, %v1346
      %v1348 = vpop.f32.mrb[0].mxu0
      %v1349 = vpop.f32.mrb[0].mxu0
      %v1350 = vadd.f32 %v1296, %v1349
      %v1351 = vpop.f32.mrb[0].mxu0
      %1352 = vdwg.mxu0
      %v1353 = vmax.f32 %v1347, 0.0
      %v1354 = vmax.f32 %v1350, 0.0
      %v1355 = vpack.c.bf16 %v1354, %v1353
      %v1356 = vld [vmem:[%s390] sm:$0xf]
      %v1357 = vld [vmem:[%s390 + $0x4] sm:$0xf]
      %v1358 = vld [vmem:[%s390 + $0x8] sm:$0xf]
      %v1359 = vld [vmem:[%s390 + $0xc] sm:$0xf]
      %v1360 = vld [vmem:[%s390 + $0x10] sm:$0xf]
      %v1361 = vld [vmem:[%s390 + $0x14] sm:$0xf]
      %v1362 = vld [vmem:[%s390 + $0x18] sm:$0xf]
      %v1363 = vld [vmem:[%s390 + $0x1c] sm:$0xf]
      %v1364 = vlaneseq
      %v1365 = vshrl.u32 %v1364, 7
      %v1366 = vsub.s32 3, %v1365
      %v1367 = vrot.slane %v407, %v1366
      %v1376 = vunpack.c.l.b16 %v1356
      %v1377 = vunpack.c.l.b16 %v1357
      %v1378 = vunpack.c.l.b16 %v1358
      %v1379 = vunpack.c.l.b16 %v1359
      %v1380 = vunpack.c.l.b16 %v1360
      %v1381 = vunpack.c.l.b16 %v1361
      %v1382 = vunpack.c.l.b16 %v1362
      %v1383 = vunpack.c.l.b16 %v1363
      %v1384 = vpack.c.b16 %v1377, %v1376
      %v1385 = vpack.c.b16 %v1379, %v1378
      %v1386 = vpack.c.b16 %v1381, %v1380
      %v1387 = vpack.c.b16 %v1383, %v1382
      %vm1392 = vcmask 523264
      %v1394 = vsel %vm1392, %v1355, 0
      %1396 = vmatprep.subr.bf16.mxu0 0
      %1397 = vmatpush1.bf16.msra.mxu0 %v1384
      %1398 = vmatprep.subr.bf16.mxu0 0
      %1399 = vmatpush1.bf16.msra.mxu0 %v1385
      %1400 = vmatprep.subr.bf16.mxu0 0
      %1401 = vmatpush1.bf16.msra.mxu0 %v1386
      %1402 = vmatprep.subr.bf16.mxu0 0
      %1403 = vmatpush1.bf16.msra.mxu0 %v1387
      %1404 = vmatprep.subr.bf16.mxu0 0
      %1405 = vmatpush1.bf16.msra.mxu0 0
      %1406 = vmatprep.subr.bf16.mxu0 0
      %1407 = vmatpush1.bf16.msra.mxu0 0
      %1408 = vmatprep.subr.bf16.mxu0 0
      %1409 = vmatpush1.bf16.msra.mxu0 0
      %1410 = vmatprep.subr.bf16.mxu0 0
      %1411 = vmatpush1.bf16.msra.mxu0 0
      %1412 = vmatprep.subr.bf16.mxu0 0
      %1413 = vmatpush1.bf16.msra.mxu0 0
      %1414 = vmatprep.subr.bf16.mxu0 0
      %1415 = vmatpush1.bf16.msra.mxu0 0
      %1416 = vmatprep.subr.bf16.mxu0 0
      %1417 = vmatpush1.bf16.msra.mxu0 0
      %1418 = vmatprep.subr.bf16.mxu0 0
      %1419 = vmatpush1.bf16.msra.mxu0 0
      %1420 = vmatprep.subr.bf16.mxu0 0
      %1421 = vmatpush1.bf16.msra.mxu0 0
      %1422 = vmatprep.subr.bf16.mxu0 0
      %1423 = vmatpush1.bf16.msra.mxu0 0
      %1424 = vmatprep.subr.bf16.mxu0 0
      %1425 = vmatpush1.bf16.msra.mxu0 0
      %1426 = vmatprep.subr.bf16.mxu0 0
      %1427 = vmatpush1.bf16.msra.mxu0 0
      %1428 = vmatprep.mubr.bf16.mxu0 0
      %1429 = vmatmul.mubr.bf16.gmra.mrb[0].mxu0 %v1394
      %v1430 = vpop.f32.mrb[0].mxu0
      %v1431 = vadd.f32 %v1367, %v1430
      %v1432 = vpop.f32.mrb[0].mxu0
      %v1433 = vpop.f32.mrb[0].mxu0
      %v1434 = vadd.f32 %v1367, %v1433
      %v1435 = vpop.f32.mrb[0].mxu0
      %1436 = vdwg.mxu0
      %v1437 = vadd.f32 %v1286, %v1431
      %v1438 = vadd.f32 %v1287, %v1434
      %v1439 = vsel %vm429, %v1437, 0.0
      %1440 = vadd.xlane.f32.xlu0 %v1439
      %v1441 = vpop.xlane.xlu0 %1440
      %v1442 = vsel %vm429, %v1438, 0.0
      %1443 = vadd.xlane.f32.xlu0 %v1442
      %v1444 = vpop.xlane.xlu0 %1443
      %v1445 = vmul.f32 %v1441, %v1255
      %v1446 = vmul.f32 %v1444, %v1255
      %v1447 = vsub.f32 %v1437, %v1445
      %v1448 = vsub.f32 %v1438, %v1446
      %v1449 = vmul.f32 %v1447, %v1447
      %v1450 = vmul.f32 %v1448, %v1448
      %v1451 = vsel %vm429, %v1449, 0.0
      %1452 = vadd.xlane.f32.xlu0 %v1451
      %v1453 = vpop.xlane.xlu0 %1452
      %v1454 = vsel %vm429, %v1450, 0.0
      %1455 = vadd.xlane.f32.xlu0 %v1454
      %v1456 = vpop.xlane.xlu0 %1455
      %v1457 = vmul.f32 %v1453, %v1255
      %v1458 = vmul.f32 %v1456, %v1255
      %v1459 = vadd.f32 %v1457, 1e-05
      %v1460 = vadd.f32 %v1458, 1e-05
      %v1461 = vrsqrt.pop %v1459
      %v1462 = vrsqrt.pop %v1460
      %v1463 = vmul.f32 %v1447, %v1461
      %v1464 = vmul.f32 %v1448, %v1462
      %v1465 = vlaneseq
      %v1466 = vshrl.u32 %v1465, 7
      %v1467 = vsub.s32 6, %v1466
      %v1468 = vrot.slane %v407, %v1467
      %v1469 = vmul.f32 %v1463, %v1468
      %v1470 = vmul.f32 %v1464, %v1468
      %v1471 = vlaneseq
      %v1472 = vshrl.u32 %v1471, 7
      %v1473 = vsub.s32 7, %v1472
      %v1474 = vrot.slane %v407, %v1473
      %v1475 = vadd.f32 %v1469, %v1474
      %v1476 = vadd.f32 %v1470, %v1474
      %1477 = vst.msk [vmem:[#allocation2] sm:$0xff] %vm429, %v1475
      %1478 = vst.msk [vmem:[#allocation2 + $0x8] sm:$0xff] %vm429, %v1476
      %p1479 = scmp.eq.s32.totalorder %s20, 1
      // Predicated region
      $region61: #{transformer_forward.1} parent=55 // pred_check
        %p1480 = pneg %p1479
      $region62: #{transformer_forward.1} parent=55 // pred_check_branch
        %1482 = sbr.rel (%p1480) target = $region64
      $region63: #{transformer_forward.1} parent=55 // pred_region
        %v1483 = vpack.c.bf16 %v1476, %v1475
        %v1484 = vld [vmem:[%s7] sm:$0xf]
        %v1485 = vld [vmem:[%s7 + $0x4] sm:$0xf]
        %v1486 = vld [vmem:[%s7 + $0x8] sm:$0xf]
        %v1487 = vld [vmem:[%s7 + $0xc] sm:$0xf]
        %v1488 = vld [vmem:[%s8] sm:$0x1]
        %v1490 = vlaneseq
        %v1491 = vshrl.u32 %v1490, 7
        %v1492 = vsub.s32 0, %v1491
        %v1493 = vrot.slane %v1488, %v1492
        %v1499 = vunpack.c.l.b16 %v1484
        %v1500 = vunpack.c.l.b16 %v1485
        %v1501 = vunpack.c.l.b16 %v1486
        %v1502 = vunpack.c.l.b16 %v1487
        %v1503 = vpack.c.b16 %v1500, %v1499
        %v1504 = vpack.c.b16 %v1502, %v1501
        %v1508 = vsel %vm429, %v1483, 0
        %1510 = vmatprep.subr.bf16.mxu0 0
        %1511 = vmatpush1.bf16.msra.mxu0 %v1503
        %1512 = vmatprep.subr.bf16.mxu0 0
        %1513 = vmatpush1.bf16.msra.mxu0 %v1504
        %1514 = vmatprep.subr.bf16.mxu0 0
        %1515 = vmatpush1.bf16.msra.mxu0 0
        %1516 = vmatprep.subr.bf16.mxu0 0
        %1517 = vmatpush1.bf16.msra.mxu0 0
        %1518 = vmatprep.subr.bf16.mxu0 0
        %1519 = vmatpush1.bf16.msra.mxu0 0
        %1520 = vmatprep.subr.bf16.mxu0 0
        %1521 = vmatpush1.bf16.msra.mxu0 0
        %1522 = vmatprep.subr.bf16.mxu0 0
        %1523 = vmatpush1.bf16.msra.mxu0 0
        %1524 = vmatprep.subr.bf16.mxu0 0
        %1525 = vmatpush1.bf16.msra.mxu0 0
        %1526 = vmatprep.subr.bf16.mxu0 0
        %1527 = vmatpush1.bf16.msra.mxu0 0
        %1528 = vmatprep.subr.bf16.mxu0 0
        %1529 = vmatpush1.bf16.msra.mxu0 0
        %1530 = vmatprep.subr.bf16.mxu0 0
        %1531 = vmatpush1.bf16.msra.mxu0 0
        %1532 = vmatprep.subr.bf16.mxu0 0
        %1533 = vmatpush1.bf16.msra.mxu0 0
        %1534 = vmatprep.subr.bf16.mxu0 0
        %1535 = vmatpush1.bf16.msra.mxu0 0
        %1536 = vmatprep.subr.bf16.mxu0 0
        %1537 = vmatpush1.bf16.msra.mxu0 0
        %1538 = vmatprep.subr.bf16.mxu0 0
        %1539 = vmatpush1.bf16.msra.mxu0 0
        %1540 = vmatprep.subr.bf16.mxu0 0
        %1541 = vmatpush1.bf16.msra.mxu0 0
        %1542 = vmatprep.mubr.bf16.mxu0 0
        %1543 = vmatmul.mubr.bf16.gmra.mrb[0].mxu0 %v1508
        %v1544 = vpop.f32.mrb[0].mxu0
        %v1545 = vadd.f32 %v1493, %v1544
        %v1546 = vpop.f32.mrb[0].mxu0
        %v1547 = vpop.f32.mrb[0].mxu0
        %v1548 = vadd.f32 %v1493, %v1547
        %v1549 = vpop.f32.mrb[0].mxu0
        %1550 = vdwg.mxu0
        %1551 = vmax.xlane.f32.xlu0 %v1545
        %v1552 = vpop.xlane.xlu0 %1551
        %1553 = vmax.xlane.f32.xlu0 %v1548
        %v1554 = vpop.xlane.xlu0 %1553
        %v1555 = vsub.f32 %v1545, %v1552
        %v1556 = vsub.f32 %v1548, %v1554
        %v1557 = vmul.f32 %v1555, 1.442695
        %v1558 = vpow.pop %v1557
        %v1559 = vmul.f32 %v1556, 1.442695
        %v1560 = vpow.pop %v1559
        %1561 = vadd.xlane.f32.xlu0 %v1558
        %v1562 = vpop.xlane.xlu0 %1561
        %1563 = vadd.xlane.f32.xlu0 %v1560
        %v1564 = vpop.xlane.xlu0 %1563
        %v1565 = vlog2.pop %v1562
        %v1566 = vmul.f32 %v1565, 0.6931472
        %v1567 = vlog2.pop %v1564
        %v1568 = vmul.f32 %v1567, 0.6931472
        %v1569 = vsub.f32 %v1555, %v1566
        %v1570 = vsub.f32 %v1556, %v1568
        %1571 = vst [vmem:[%s9] sm:$0xff] %v1569
        %1572 = vst [vmem:[%s9 + $0x8] sm:$0xff] %v1570
      $region64: #{transformer_forward.1} parent=55 // pred_fallthru
        _
      // Predicated region
      $region65: #{transformer_forward.1} parent=55 // pred_check
        %p1573 = pneg %p247
      $region66: #{transformer_forward.1} parent=55 // pred_check_branch
        %1575 = sbr.rel (%p1573) target = $region68
      $region67: #{transformer_forward.1} parent=55 // pred_region
        _
      $region68: #{transformer_forward.1} parent=55 // pred_fallthru
        _
      // Predicated region
      $region69: #{transformer_forward.1} parent=55 // pred_check
        %p1576 = pneg %p247
      $region70: #{transformer_forward.1} parent=55 // pred_check_branch
        %1578 = sbr.rel (%p1576) target = $region72
      $region71: #{transformer_forward.1} parent=55 // pred_region
        _
      $region72: #{transformer_forward.1} parent=55 // pred_fallthru
        _
    $region56: #{transformer_forward.1} parent=5 // pred_fallthru
      _
    %p1579 = scmp.le.s32.totalorder 2, %s15
    // Predicated region
    $region73: #{transformer_forward.1} parent=5 // pred_check
      %p1580 = pneg %p1579
    $region74: #{transformer_forward.1} parent=5 // pred_check_branch
      %1582 = sbr.rel (%p1580) target = $region76
    $region75: #{transformer_forward.1} parent=5 // pred_region
      %s1583 = ssub.s32 %s15, 2
    $region76: #{transformer_forward.1} parent=5 // pred_fallthru
      _
  $region6: #{transformer_forward.1} parent=0 // loop_footer
    %s19 = sadd.s32 1, %s15
  $region7: #{transformer_forward.1} parent=0 // loop_footer_branch
    %14 = sbr.rel target = $region3
  $region8: #{transformer_forward.1} parent=0 // loop_exit
    _

</llo_original>
